<compile_context>
chip_gen: v7x
topology: tpu7x:2x2x1
jax: 0.10.0
libtpu: 0.0.40
codegen_flags: <defaults>
</compile_context>

<pallas_src>
import functools

import jax
import jax.numpy as jnp
from jax.experimental import pallas as pl
from jax.experimental.pallas import tpu as pltpu

LANE = 128  # TPU vreg lane width


def _decoder_kernel(enc_ref, slab_ref, out_ref, *, T, H, Wt):
    """Full T-step pointer decode for ONE batch element (grid runs over batch).

    enc_ref  : [1, S, H]      this batch row's encoder output
    slab_ref : [R, 5*128]     packed parameters (see _pack_params)
    out_ref  : [1, T, S]      log-probs for this batch row (PyTorch layout)
    """
    S = enc_ref.shape[1]
    enc = enc_ref[0]                                            # [S, H]

    # ---- hoisted, lane-aligned parameter views (loaded once, stay resident) ----
    whh = slab_ref[0:H, 0:3 * LANE]                             # [H, 3*128] gate blocks i|f|g
    w2 = slab_ref[0:H, 3 * LANE:4 * LANE]                       # [H, 128]   (cols >= Wt zero)
    w1 = slab_ref[0:H, 4 * LANE:5 * LANE]                       # [H, 128]   (cols >= Wt zero)
    bias = slab_ref[H:H + 1, 0:3 * LANE]                        # [1, 3*128] b_ih+b_hh (i,f,g)
    vt = slab_ref[H + 1:H + 2, 0:LANE]                          # [1, 128]   (cols >= Wt zero)

    # LSTMCell's cell input is the constant last encoder timestep every step (PyTorch quirk:
    # cell_state is never updated; only c' feeds back as the *hidden* input).
    cell = enc[S - 1:S, :]                                      # [1, H]

    # blend1 = W1(encoder_output) -- loop invariant, one MXU matmul (no reshape of enc).
    blend1 = jnp.dot(enc, w1, preferred_element_type=jnp.float32)       # [S, 128]

    # decoder_input is identically zero -> weight_ih contributes exactly 0; x-side = bias.
    x_gates = bias                                              # [1, 3*128]

    # Step-0 hidden is zeros, so its Whh contribution is zero.
    hh = jnp.zeros((1, 3 * LANE), jnp.float32)

    # ---- serial recurrence: minimal critical path (add, 3 activations, c_new, Whh matmul).
    # All slices below start at lane offsets that are multiples of 128 (vreg-aligned).
    c_steps = []
    for t in range(T):                                          # T small & static -> unrolled
        gates = x_gates + hh                                    # [1, 3*128]
        i_g = jax.nn.sigmoid(gates[:, 0 * LANE:0 * LANE + H])
        f_g = jax.nn.sigmoid(gates[:, 1 * LANE:1 * LANE + H])
        g_g = jnp.tanh(gates[:, 2 * LANE:2 * LANE + H])
        c_new = f_g * cell + i_g * g_g                          # [1, H] == hidden for t+1
        c_steps.append(c_new)
        if t + 1 < T:                                           # last step's Whh result is dead
            hh = jnp.dot(c_new, whh, preferred_element_type=jnp.float32)

    # ---- batched attention tail (off the recurrence critical path, done once) ----
    c_all = jnp.concatenate(c_steps, axis=0)                    # [T, H]
    blend2 = jnp.dot(c_all, w2, preferred_element_type=jnp.float32)     # [T, 128]
    blend_sum = jnp.tanh(blend1[None, :, :] + blend2[:, None, :])       # [T, S, 128]
    scores = jnp.sum(blend_sum * vt[None, :, :], axis=-1)               # [T, S]

    # log_softmax over the encoder sequence axis.
    m = jnp.max(scores, axis=-1, keepdims=True)
    z = scores - m
    logp = z - jnp.log(jnp.sum(jnp.exp(z), axis=-1, keepdims=True))     # [T, S]

    # Single store for the whole batch row (previously 8 masked per-step stores).
    out_ref[...] = logp[None, :, :]


def _pack_params(params, H, Wt):
    """Pack all consumed parameters into one lane-aligned f32 slab (single input DMA).

    Rows 0:H   cols [0:128 | 128:256 | 256:384] -> weight_hh^T gate blocks (i, f, g)
               cols [384:512]                   -> W2^T (zero-padded to 128 lanes)
               cols [512:640]                   -> W1^T (zero-padded to 128 lanes)
    Row  H     cols [0:384]                     -> b_ih + b_hh gate blocks (i, f, g)
    Row  H+1   cols [0:128]                     -> vt   (zero-padded to 128 lanes)

    The o-gate rows of weight_hh / bias are dropped: h' is never consumed downstream.
    weight_ih is not packed at all: decoder_input is identically zero in forward().
    """
    rows = ((H + 2 + 7) // 8) * 8
    slab = jnp.zeros((rows, 5 * LANE), jnp.float32)
    w_hh = params["w_hh"].astype(jnp.float32)                   # [4H, H], gate order i,f,g,o
    bias = (params["b_ih"] + params["b_hh"]).astype(jnp.float32)
    for k in range(3):
        slab = slab.at[0:H, k * LANE:k * LANE + H].set(w_hh[k * H:(k + 1) * H, :].T)
        slab = slab.at[H, k * LANE:k * LANE + H].set(bias[k * H:(k + 1) * H])
    slab = slab.at[0:H, 3 * LANE:3 * LANE + Wt].set(params["W2"].astype(jnp.float32).T)
    slab = slab.at[0:H, 4 * LANE:4 * LANE + Wt].set(params["W1"].astype(jnp.float32).T)
    slab = slab.at[H + 1, 0:Wt].set(params["vt"].astype(jnp.float32)[0])
    return slab


def decoder_pointer_attention(input_tokens, encoder_output, params, *,
                              sequence_length, emb_size, hidden_size, weight_size):
    # input_tokens only supplies the batch size, exactly like the PyTorch forward().
    B = input_tokens.shape[0]
    S = encoder_output.shape[1]
    H = hidden_size
    Wt = weight_size
    T = sequence_length
    del emb_size  # decoder_input is all-zeros -> weight_ih path is exactly zero

    slab = _pack_params(params, H, Wt)
    kernel = functools.partial(_decoder_kernel, T=T, H=H, Wt=Wt)

    flops = int(B * (2 * S * H * Wt                  # blend1 (once per batch row)
                     + (T - 1) * 2 * H * 3 * H       # recurrent Whh matmuls
                     + 2 * T * H * Wt                # batched W2 matmul
                     + 2 * T * S * Wt))              # vt reduce
    transcendentals = int(B * T * (3 * H + S * Wt + S + 1))
    bytes_accessed = int(4 * (B * S * H + slab.size + B * T * S))

    out = pl.pallas_call(
        kernel,
        out_shape=jax.ShapeDtypeStruct((B, T, S), jnp.float32),
        grid=(B,),
        in_specs=[
            pl.BlockSpec((1, S, H), lambda b: (b, 0, 0)),        # per-batch encoder block
            pl.BlockSpec(slab.shape, lambda b: (0, 0)),          # params resident across grid
        ],
        out_specs=pl.BlockSpec((1, T, S), lambda b: (b, 0, 0)),
        compiler_params=pltpu.CompilerParams(
            dimension_semantics=("parallel",)),                  # batch is fully parallel (v7x 2 TCs)
        cost_estimate=pl.CostEstimate(flops=flops,
                                      transcendentals=transcendentals,
                                      bytes_accessed=bytes_accessed),
    )(encoder_output.astype(jnp.float32), slab)

    # Already in the PyTorch output layout [B, T, S].
    return out


def reference_forward(encoder_output, params, *, sequence_length, emb_size, hidden_size):
    """Plain-JAX transcription of the PyTorch forward (seq-first, like the torch code)."""
    B, S, H = encoder_output.shape
    assert H == hidden_size
    cell_state = jnp.transpose(encoder_output, (1, 0, 2))[-1]            # [B, H]
    hidden = jnp.zeros((B, hidden_size), jnp.float32)
    dec_in = jnp.zeros((B, emb_size), jnp.float32)
    enc_t = jnp.transpose(encoder_output, (1, 0, 2))                     # [S, B, H]
    probs = []
    for _ in range(sequence_length):
        gates = (dec_in @ params["w_ih"].T + params["b_ih"]
                 + hidden @ params["w_hh"].T + params["b_hh"])
        i_g = jax.nn.sigmoid(gates[:, 0 * H:1 * H])
        f_g = jax.nn.sigmoid(gates[:, 1 * H:2 * H])
        g_g = jnp.tanh(gates[:, 2 * H:3 * H])
        c_new = f_g * cell_state + i_g * g_g
        hidden = c_new                                                   # `hidden` <- c'
        blend1 = enc_t @ params["W1"].T                                  # [S, B, Wt]
        blend2 = hidden @ params["W2"].T                                 # [B, Wt]
        blend_sum = jnp.tanh(blend1 + blend2)
        out = (blend_sum @ params["vt"].T).squeeze()                     # [S, B]
        out = jax.nn.log_softmax(out.T, axis=-1)                         # [B, S]
        probs.append(out)
    return jnp.stack(probs, axis=1)                                      # [B, T, S]


if __name__ == "__main__":
    # Model hyper-parameters (config.weight_size -> weight_size here).
    input_size = 8        # == self.sequence_length (decode loop length)
    emb_size = 4
    hidden_size = 32
    output_size = 10      # for the unused self.layer_2
    weight_size = 16
    batch = 2
    enc_seq = 8           # encoder sequence length (attention span)

    key = jax.random.PRNGKey(0)
    ks = jax.random.split(key, 10)
    u = lambda k, shape, bound: jax.random.uniform(k, shape, jnp.float32, -bound, bound)
    hb = 1.0 / jnp.sqrt(hidden_size)

    params = {
        "w_ih": u(ks[0], (4 * hidden_size, emb_size), hb),     # LSTMCell weight_ih (unused: x==0)
        "w_hh": u(ks[1], (4 * hidden_size, hidden_size), hb),  # LSTMCell weight_hh
        "b_ih": u(ks[2], (4 * hidden_size,), hb),
        "b_hh": u(ks[3], (4 * hidden_size,), hb),
        "W1": u(ks[4], (weight_size, hidden_size), hb),        # Linear(H, Wt, bias=False)
        "W2": u(ks[5], (weight_size, hidden_size), hb),
        "vt": u(ks[6], (1, weight_size), 1.0 / jnp.sqrt(weight_size)),
        # layer_2 exists in __init__ but is never used in forward().
        "layer_2_w": u(ks[7], (output_size, hidden_size), hb),
        "layer_2_b": u(ks[8], (output_size,), hb),
    }

    input_tokens = jax.random.randint(ks[9], (batch, input_size), 0, enc_seq)
    encoder_output = jax.random.normal(
        jax.random.fold_in(key, 123), (batch, enc_seq, hidden_size), jnp.float32)

    run = functools.partial(decoder_pointer_attention,
                            sequence_length=input_size, emb_size=emb_size,
                            hidden_size=hidden_size, weight_size=weight_size)
    probs = jax.block_until_ready(run(input_tokens, encoder_output, params))

    ref = reference_forward(encoder_output, params,
                            sequence_length=input_size, emb_size=emb_size,
                            hidden_size=hidden_size)
    assert probs.shape == (batch, input_size, enc_seq), probs.shape
    err = float(jnp.max(jnp.abs(probs - ref)))
    assert jnp.allclose(probs, ref, atol=5e-5, rtol=1e-5), err
    print("KERNEL_OK")
</pallas_src>

<mosaic_0001>
module attributes {stable_mosaic.version = 11 : i64} {
  func.func @_decoder_kernel(%arg0: i32, %arg1: memref<1x8x32xf32, #tpu.memory_space<vmem>>, %arg2: memref<40x640xf32, #tpu.memory_space<vmem>>, %arg3: memref<1x8x8xf32, #tpu.memory_space<vmem>>) attributes {dimension_semantics = [#tpu.dimension_semantics<parallel>], iteration_bounds = array<i64: 2>, scalar_prefetch = 0 : i64, scratch_operands = 0 : i64, tpu.core_type = #tpu.core_type<tc>, window_params = [{transform_indices = @transform_0, window_bounds = array<i64: 1, 8, 32>}, {pipeline_mode = #tpu.pipeline_mode<synchronous>, transform_indices = @transform_1, window_bounds = array<i64: 40, 640>}, {transform_indices = @transform_2, window_bounds = array<i64: 1, 8, 8>}]} {
    %c0 = arith.constant 0 : index
    %c0_0 = arith.constant 0 : index
    %c0_1 = arith.constant 0 : index
    %0 = vector.load %arg1[%c0, %c0_0, %c0_1] : memref<1x8x32xf32, #tpu.memory_space<vmem>>, vector<1x8x32xf32>
    %1 = vector.shape_cast %0 : vector<1x8x32xf32> to vector<8x32xf32>
    %c0_2 = arith.constant 0 : index
    %c0_3 = arith.constant 0 : index
    %2 = vector.load %arg2[%c0_2, %c0_3] : memref<40x640xf32, #tpu.memory_space<vmem>>, vector<32x384xf32>
    %c0_4 = arith.constant 0 : index
    %c384 = arith.constant 384 : index
    %3 = vector.load %arg2[%c0_4, %c384] : memref<40x640xf32, #tpu.memory_space<vmem>>, vector<32x128xf32>
    %c0_5 = arith.constant 0 : index
    %c512 = arith.constant 512 : index
    %4 = vector.load %arg2[%c0_5, %c512] : memref<40x640xf32, #tpu.memory_space<vmem>>, vector<32x128xf32>
    %c32 = arith.constant 32 : index
    %c0_6 = arith.constant 0 : index
    %5 = vector.load %arg2[%c32, %c0_6] : memref<40x640xf32, #tpu.memory_space<vmem>>, vector<1x384xf32>
    %c33 = arith.constant 33 : index
    %c0_7 = arith.constant 0 : index
    %6 = vector.load %arg2[%c33, %c0_7] : memref<40x640xf32, #tpu.memory_space<vmem>>, vector<1x128xf32>
    %7 = vector.extract_strided_slice %1 {offsets = [7, 0], sizes = [1, 32], strides = [1, 1]} : vector<8x32xf32> to vector<1x32xf32>
    %cst = arith.constant dense<0.000000e+00> : vector<8x128xf32>
    %8 = tpu.matmul %1, %4, %cst {dimension_numbers = #tpu.dot_dimension_numbers<[1], [0], [0], [1], [0, 0, 1, 1], [], []>} : vector<8x32xf32>, vector<32x128xf32>, vector<8x128xf32> -> vector<8x128xf32>
    %cst_8 = arith.constant 0.000000e+00 : f32
    %9 = vector.broadcast %cst_8 : f32 to vector<1x384xf32>
    %10 = arith.addf %5, %9 : vector<1x384xf32>
    %11 = vector.extract_strided_slice %10 {offsets = [0, 0], sizes = [1, 32], strides = [1, 1]} : vector<1x384xf32> to vector<1x32xf32>
    %12 = arith.negf %11 : vector<1x32xf32>
    %13 = math.exp %12 : vector<1x32xf32>
    %cst_9 = arith.constant 1.000000e+00 : f32
    %14 = vector.broadcast %cst_9 : f32 to vector<1x32xf32>
    %15 = arith.addf %14, %13 : vector<1x32xf32>
    %16 = arith.divf %14, %15 : vector<1x32xf32>
    %17 = vector.extract_strided_slice %10 {offsets = [0, 128], sizes = [1, 32], strides = [1, 1]} : vector<1x384xf32> to vector<1x32xf32>
    %18 = arith.negf %17 : vector<1x32xf32>
    %19 = math.exp %18 : vector<1x32xf32>
    %cst_10 = arith.constant 1.000000e+00 : f32
    %20 = vector.broadcast %cst_10 : f32 to vector<1x32xf32>
    %21 = arith.addf %20, %19 : vector<1x32xf32>
    %22 = arith.divf %20, %21 : vector<1x32xf32>
    %23 = vector.extract_strided_slice %10 {offsets = [0, 256], sizes = [1, 32], strides = [1, 1]} : vector<1x384xf32> to vector<1x32xf32>
    %24 = math.tanh %23 : vector<1x32xf32>
    %25 = arith.mulf %22, %7 : vector<1x32xf32>
    %26 = arith.mulf %16, %24 : vector<1x32xf32>
    %27 = arith.addf %25, %26 : vector<1x32xf32>
    %cst_11 = arith.constant dense<0.000000e+00> : vector<1x384xf32>
    %28 = tpu.matmul %27, %2, %cst_11 {dimension_numbers = #tpu.dot_dimension_numbers<[1], [0], [0], [1], [0, 0, 1, 1], [], []>} : vector<1x32xf32>, vector<32x384xf32>, vector<1x384xf32> -> vector<1x384xf32>
    %29 = arith.addf %5, %28 : vector<1x384xf32>
    %30 = vector.extract_strided_slice %29 {offsets = [0, 0], sizes = [1, 32], strides = [1, 1]} : vector<1x384xf32> to vector<1x32xf32>
    %31 = arith.negf %30 : vector<1x32xf32>
    %32 = math.exp %31 : vector<1x32xf32>
    %cst_12 = arith.constant 1.000000e+00 : f32
    %33 = vector.broadcast %cst_12 : f32 to vector<1x32xf32>
    %34 = arith.addf %33, %32 : vector<1x32xf32>
    %35 = arith.divf %33, %34 : vector<1x32xf32>
    %36 = vector.extract_strided_slice %29 {offsets = [0, 128], sizes = [1, 32], strides = [1, 1]} : vector<1x384xf32> to vector<1x32xf32>
    %37 = arith.negf %36 : vector<1x32xf32>
    %38 = math.exp %37 : vector<1x32xf32>
    %cst_13 = arith.constant 1.000000e+00 : f32
    %39 = vector.broadcast %cst_13 : f32 to vector<1x32xf32>
    %40 = arith.addf %39, %38 : vector<1x32xf32>
    %41 = arith.divf %39, %40 : vector<1x32xf32>
    %42 = vector.extract_strided_slice %29 {offsets = [0, 256], sizes = [1, 32], strides = [1, 1]} : vector<1x384xf32> to vector<1x32xf32>
    %43 = math.tanh %42 : vector<1x32xf32>
    %44 = arith.mulf %41, %7 : vector<1x32xf32>
    %45 = arith.mulf %35, %43 : vector<1x32xf32>
    %46 = arith.addf %44, %45 : vector<1x32xf32>
    %cst_14 = arith.constant dense<0.000000e+00> : vector<1x384xf32>
    %47 = tpu.matmul %46, %2, %cst_14 {dimension_numbers = #tpu.dot_dimension_numbers<[1], [0], [0], [1], [0, 0, 1, 1], [], []>} : vector<1x32xf32>, vector<32x384xf32>, vector<1x384xf32> -> vector<1x384xf32>
    %48 = arith.addf %5, %47 : vector<1x384xf32>
    %49 = vector.extract_strided_slice %48 {offsets = [0, 0], sizes = [1, 32], strides = [1, 1]} : vector<1x384xf32> to vector<1x32xf32>
    %50 = arith.negf %49 : vector<1x32xf32>
    %51 = math.exp %50 : vector<1x32xf32>
    %cst_15 = arith.constant 1.000000e+00 : f32
    %52 = vector.broadcast %cst_15 : f32 to vector<1x32xf32>
    %53 = arith.addf %52, %51 : vector<1x32xf32>
    %54 = arith.divf %52, %53 : vector<1x32xf32>
    %55 = vector.extract_strided_slice %48 {offsets = [0, 128], sizes = [1, 32], strides = [1, 1]} : vector<1x384xf32> to vector<1x32xf32>
    %56 = arith.negf %55 : vector<1x32xf32>
    %57 = math.exp %56 : vector<1x32xf32>
    %cst_16 = arith.constant 1.000000e+00 : f32
    %58 = vector.broadcast %cst_16 : f32 to vector<1x32xf32>
    %59 = arith.addf %58, %57 : vector<1x32xf32>
    %60 = arith.divf %58, %59 : vector<1x32xf32>
    %61 = vector.extract_strided_slice %48 {offsets = [0, 256], sizes = [1, 32], strides = [1, 1]} : vector<1x384xf32> to vector<1x32xf32>
    %62 = math.tanh %61 : vector<1x32xf32>
    %63 = arith.mulf %60, %7 : vector<1x32xf32>
    %64 = arith.mulf %54, %62 : vector<1x32xf32>
    %65 = arith.addf %63, %64 : vector<1x32xf32>
    %cst_17 = arith.constant dense<0.000000e+00> : vector<1x384xf32>
    %66 = tpu.matmul %65, %2, %cst_17 {dimension_numbers = #tpu.dot_dimension_numbers<[1], [0], [0], [1], [0, 0, 1, 1], [], []>} : vector<1x32xf32>, vector<32x384xf32>, vector<1x384xf32> -> vector<1x384xf32>
    %67 = arith.addf %5, %66 : vector<1x384xf32>
    %68 = vector.extract_strided_slice %67 {offsets = [0, 0], sizes = [1, 32], strides = [1, 1]} : vector<1x384xf32> to vector<1x32xf32>
    %69 = arith.negf %68 : vector<1x32xf32>
    %70 = math.exp %69 : vector<1x32xf32>
    %cst_18 = arith.constant 1.000000e+00 : f32
    %71 = vector.broadcast %cst_18 : f32 to vector<1x32xf32>
    %72 = arith.addf %71, %70 : vector<1x32xf32>
    %73 = arith.divf %71, %72 : vector<1x32xf32>
    %74 = vector.extract_strided_slice %67 {offsets = [0, 128], sizes = [1, 32], strides = [1, 1]} : vector<1x384xf32> to vector<1x32xf32>
    %75 = arith.negf %74 : vector<1x32xf32>
    %76 = math.exp %75 : vector<1x32xf32>
    %cst_19 = arith.constant 1.000000e+00 : f32
    %77 = vector.broadcast %cst_19 : f32 to vector<1x32xf32>
    %78 = arith.addf %77, %76 : vector<1x32xf32>
    %79 = arith.divf %77, %78 : vector<1x32xf32>
    %80 = vector.extract_strided_slice %67 {offsets = [0, 256], sizes = [1, 32], strides = [1, 1]} : vector<1x384xf32> to vector<1x32xf32>
    %81 = math.tanh %80 : vector<1x32xf32>
    %82 = arith.mulf %79, %7 : vector<1x32xf32>
    %83 = arith.mulf %73, %81 : vector<1x32xf32>
    %84 = arith.addf %82, %83 : vector<1x32xf32>
    %cst_20 = arith.constant dense<0.000000e+00> : vector<1x384xf32>
    %85 = tpu.matmul %84, %2, %cst_20 {dimension_numbers = #tpu.dot_dimension_numbers<[1], [0], [0], [1], [0, 0, 1, 1], [], []>} : vector<1x32xf32>, vector<32x384xf32>, vector<1x384xf32> -> vector<1x384xf32>
    %86 = arith.addf %5, %85 : vector<1x384xf32>
    %87 = vector.extract_strided_slice %86 {offsets = [0, 0], sizes = [1, 32], strides = [1, 1]} : vector<1x384xf32> to vector<1x32xf32>
    %88 = arith.negf %87 : vector<1x32xf32>
    %89 = math.exp %88 : vector<1x32xf32>
    %cst_21 = arith.constant 1.000000e+00 : f32
    %90 = vector.broadcast %cst_21 : f32 to vector<1x32xf32>
    %91 = arith.addf %90, %89 : vector<1x32xf32>
    %92 = arith.divf %90, %91 : vector<1x32xf32>
    %93 = vector.extract_strided_slice %86 {offsets = [0, 128], sizes = [1, 32], strides = [1, 1]} : vector<1x384xf32> to vector<1x32xf32>
    %94 = arith.negf %93 : vector<1x32xf32>
    %95 = math.exp %94 : vector<1x32xf32>
    %cst_22 = arith.constant 1.000000e+00 : f32
    %96 = vector.broadcast %cst_22 : f32 to vector<1x32xf32>
    %97 = arith.addf %96, %95 : vector<1x32xf32>
    %98 = arith.divf %96, %97 : vector<1x32xf32>
    %99 = vector.extract_strided_slice %86 {offsets = [0, 256], sizes = [1, 32], strides = [1, 1]} : vector<1x384xf32> to vector<1x32xf32>
    %100 = math.tanh %99 : vector<1x32xf32>
    %101 = arith.mulf %98, %7 : vector<1x32xf32>
    %102 = arith.mulf %92, %100 : vector<1x32xf32>
    %103 = arith.addf %101, %102 : vector<1x32xf32>
    %cst_23 = arith.constant dense<0.000000e+00> : vector<1x384xf32>
    %104 = tpu.matmul %103, %2, %cst_23 {dimension_numbers = #tpu.dot_dimension_numbers<[1], [0], [0], [1], [0, 0, 1, 1], [], []>} : vector<1x32xf32>, vector<32x384xf32>, vector<1x384xf32> -> vector<1x384xf32>
    %105 = arith.addf %5, %104 : vector<1x384xf32>
    %106 = vector.extract_strided_slice %105 {offsets = [0, 0], sizes = [1, 32], strides = [1, 1]} : vector<1x384xf32> to vector<1x32xf32>
    %107 = arith.negf %106 : vector<1x32xf32>
    %108 = math.exp %107 : vector<1x32xf32>
    %cst_24 = arith.constant 1.000000e+00 : f32
    %109 = vector.broadcast %cst_24 : f32 to vector<1x32xf32>
    %110 = arith.addf %109, %108 : vector<1x32xf32>
    %111 = arith.divf %109, %110 : vector<1x32xf32>
    %112 = vector.extract_strided_slice %105 {offsets = [0, 128], sizes = [1, 32], strides = [1, 1]} : vector<1x384xf32> to vector<1x32xf32>
    %113 = arith.negf %112 : vector<1x32xf32>
    %114 = math.exp %113 : vector<1x32xf32>
    %cst_25 = arith.constant 1.000000e+00 : f32
    %115 = vector.broadcast %cst_25 : f32 to vector<1x32xf32>
    %116 = arith.addf %115, %114 : vector<1x32xf32>
    %117 = arith.divf %115, %116 : vector<1x32xf32>
    %118 = vector.extract_strided_slice %105 {offsets = [0, 256], sizes = [1, 32], strides = [1, 1]} : vector<1x384xf32> to vector<1x32xf32>
    %119 = math.tanh %118 : vector<1x32xf32>
    %120 = arith.mulf %117, %7 : vector<1x32xf32>
    %121 = arith.mulf %111, %119 : vector<1x32xf32>
    %122 = arith.addf %120, %121 : vector<1x32xf32>
    %cst_26 = arith.constant dense<0.000000e+00> : vector<1x384xf32>
    %123 = tpu.matmul %122, %2, %cst_26 {dimension_numbers = #tpu.dot_dimension_numbers<[1], [0], [0], [1], [0, 0, 1, 1], [], []>} : vector<1x32xf32>, vector<32x384xf32>, vector<1x384xf32> -> vector<1x384xf32>
    %124 = arith.addf %5, %123 : vector<1x384xf32>
    %125 = vector.extract_strided_slice %124 {offsets = [0, 0], sizes = [1, 32], strides = [1, 1]} : vector<1x384xf32> to vector<1x32xf32>
    %126 = arith.negf %125 : vector<1x32xf32>
    %127 = math.exp %126 : vector<1x32xf32>
    %cst_27 = arith.constant 1.000000e+00 : f32
    %128 = vector.broadcast %cst_27 : f32 to vector<1x32xf32>
    %129 = arith.addf %128, %127 : vector<1x32xf32>
    %130 = arith.divf %128, %129 : vector<1x32xf32>
    %131 = vector.extract_strided_slice %124 {offsets = [0, 128], sizes = [1, 32], strides = [1, 1]} : vector<1x384xf32> to vector<1x32xf32>
    %132 = arith.negf %131 : vector<1x32xf32>
    %133 = math.exp %132 : vector<1x32xf32>
    %cst_28 = arith.constant 1.000000e+00 : f32
    %134 = vector.broadcast %cst_28 : f32 to vector<1x32xf32>
    %135 = arith.addf %134, %133 : vector<1x32xf32>
    %136 = arith.divf %134, %135 : vector<1x32xf32>
    %137 = vector.extract_strided_slice %124 {offsets = [0, 256], sizes = [1, 32], strides = [1, 1]} : vector<1x384xf32> to vector<1x32xf32>
    %138 = math.tanh %137 : vector<1x32xf32>
    %139 = arith.mulf %136, %7 : vector<1x32xf32>
    %140 = arith.mulf %130, %138 : vector<1x32xf32>
    %141 = arith.addf %139, %140 : vector<1x32xf32>
    %cst_29 = arith.constant dense<0.000000e+00> : vector<1x384xf32>
    %142 = tpu.matmul %141, %2, %cst_29 {dimension_numbers = #tpu.dot_dimension_numbers<[1], [0], [0], [1], [0, 0, 1, 1], [], []>} : vector<1x32xf32>, vector<32x384xf32>, vector<1x384xf32> -> vector<1x384xf32>
    %143 = arith.addf %5, %142 : vector<1x384xf32>
    %144 = vector.extract_strided_slice %143 {offsets = [0, 0], sizes = [1, 32], strides = [1, 1]} : vector<1x384xf32> to vector<1x32xf32>
    %145 = arith.negf %144 : vector<1x32xf32>
    %146 = math.exp %145 : vector<1x32xf32>
    %cst_30 = arith.constant 1.000000e+00 : f32
    %147 = vector.broadcast %cst_30 : f32 to vector<1x32xf32>
    %148 = arith.addf %147, %146 : vector<1x32xf32>
    %149 = arith.divf %147, %148 : vector<1x32xf32>
    %150 = vector.extract_strided_slice %143 {offsets = [0, 128], sizes = [1, 32], strides = [1, 1]} : vector<1x384xf32> to vector<1x32xf32>
    %151 = arith.negf %150 : vector<1x32xf32>
    %152 = math.exp %151 : vector<1x32xf32>
    %cst_31 = arith.constant 1.000000e+00 : f32
    %153 = vector.broadcast %cst_31 : f32 to vector<1x32xf32>
    %154 = arith.addf %153, %152 : vector<1x32xf32>
    %155 = arith.divf %153, %154 : vector<1x32xf32>
    %156 = vector.extract_strided_slice %143 {offsets = [0, 256], sizes = [1, 32], strides = [1, 1]} : vector<1x384xf32> to vector<1x32xf32>
    %157 = math.tanh %156 : vector<1x32xf32>
    %158 = arith.mulf %155, %7 : vector<1x32xf32>
    %159 = arith.mulf %149, %157 : vector<1x32xf32>
    %160 = arith.addf %158, %159 : vector<1x32xf32>
    %161 = tpu.concatenate %27, %46, %65, %84, %103, %122, %141, %160 in 0 : vector<1x32xf32>, vector<1x32xf32>, vector<1x32xf32>, vector<1x32xf32>, vector<1x32xf32>, vector<1x32xf32>, vector<1x32xf32>, vector<1x32xf32> -> vector<8x32xf32>
    %cst_32 = arith.constant dense<0.000000e+00> : vector<8x128xf32>
    %162 = tpu.matmul %161, %3, %cst_32 {dimension_numbers = #tpu.dot_dimension_numbers<[1], [0], [0], [1], [0, 0, 1, 1], [], []>} : vector<8x32xf32>, vector<32x128xf32>, vector<8x128xf32> -> vector<8x128xf32>
    %163 = vector.shape_cast %8 : vector<8x128xf32> to vector<1x8x128xf32>
    %164 = vector.shape_cast %162 : vector<8x128xf32> to vector<8x1x128xf32>
    %165 = vector.broadcast %163 : vector<1x8x128xf32> to vector<8x8x128xf32>
    %166 = vector.broadcast %164 : vector<8x1x128xf32> to vector<8x8x128xf32>
    %167 = arith.addf %165, %166 : vector<8x8x128xf32>
    %168 = math.tanh %167 : vector<8x8x128xf32>
    %169 = vector.shape_cast %6 : vector<1x128xf32> to vector<1x1x128xf32>
    %170 = vector.broadcast %169 : vector<1x1x128xf32> to vector<8x8x128xf32>
    %171 = arith.mulf %168, %170 : vector<8x8x128xf32>
    %cst_33 = arith.constant dense<0.000000e+00> : vector<8x8xf32>
    %172 = vector.multi_reduction <add>, %171, %cst_33 [2] : vector<8x8x128xf32> to vector<8x8xf32>
    %cst_34 = arith.constant dense<0xFF800000> : vector<8xf32>
    %173 = vector.multi_reduction <maximumf>, %172, %cst_34 [1] : vector<8x8xf32> to vector<8xf32>
    %174 = vector.shape_cast %173 : vector<8xf32> to vector<8x1xf32>
    %175 = vector.broadcast %174 : vector<8x1xf32> to vector<8x8xf32>
    %176 = arith.subf %172, %175 : vector<8x8xf32>
    %177 = math.exp %176 : vector<8x8xf32>
    %cst_35 = arith.constant dense<0.000000e+00> : vector<8xf32>
    %178 = vector.multi_reduction <add>, %177, %cst_35 [1] : vector<8x8xf32> to vector<8xf32>
    %179 = vector.shape_cast %178 : vector<8xf32> to vector<8x1xf32>
    %180 = math.log %179 : vector<8x1xf32>
    %181 = vector.broadcast %180 : vector<8x1xf32> to vector<8x8xf32>
    %182 = arith.subf %176, %181 : vector<8x8xf32>
    %183 = vector.shape_cast %182 : vector<8x8xf32> to vector<1x8x8xf32>
    %c0_36 = arith.constant 0 : index
    %c0_37 = arith.constant 0 : index
    %c0_38 = arith.constant 0 : index
    %184 = vector.load %arg3[%c0_36, %c0_37, %c0_38] : memref<1x8x8xf32, #tpu.memory_space<vmem>>, vector<1x8x8xf32>
    tpu.vector_store %arg3[%c0_36, %c0_37, %c0_38], %183 {strides = array<i32>} : memref<1x8x8xf32, #tpu.memory_space<vmem>>, vector<1x8x8xf32>,
    return
  }
  func.func @transform_0(%arg0: i32) -> (i32, i32, i32) {
    %c0_i32 = arith.constant 0 : i32
    %c0_i32_0 = arith.constant 0 : i32
    %c0_i32_1 = arith.constant 0 : i32
    return %arg0, %c0_i32, %c0_i32_0 : i32, i32, i32
  }
  func.func @transform_1(%arg0: i32) -> (i32, i32) {
    %c0_i32 = arith.constant 0 : i32
    %c0_i32_0 = arith.constant 0 : i32
    %c0_i32_1 = arith.constant 0 : i32
    return %c0_i32, %c0_i32_0 : i32, i32
  }
  func.func @transform_2(%arg0: i32) -> (i32, i32, i32) {
    %c0_i32 = arith.constant 0 : i32
    %c0_i32_0 = arith.constant 0 : i32
    %c0_i32_1 = arith.constant 0 : i32
    return %arg0, %c0_i32, %c0_i32_0 : i32, i32, i32
  }
}

</mosaic_0001>

<llo_original>
// kernel: tpu_custom_call.1
$region0: #{tpu_custom_call.1}
  #allocation0 [shape = 'u32[]', space=smem, size = 0x4, offset = 0x4, fixed_abs, tag = 'smem constant byte address 0x4 - core index']
  #allocation1 [shape = 'u32[144,128]{1,0:T(1,128)}', space=vmem, size = 0x12000, scoped, tag = 'internal scratch']
  %s0 = inlined_call_operand.hbm [shape: f32[2,8,32], index: 0, kind: input, shape index: {}]
  %s1 = inlined_call_operand.hbm [shape: f32[40,640], index: 1, kind: input, shape index: {}]
  %s2 = inlined_call_operand.hbm [shape: f32[2,8,8], index: 2, kind: output, shape index: {}]
  %s3 = sld [smem:[#allocation0]]
  $region49: #{tpu_custom_call.1} parent=0
    _
  %s5 = ssub.s32 1, %s3
  %s6 = scalar_select 0, %s5, %s3
  $region1: #{tpu_custom_call.1} parent=0
    #allocation2 [shape = 'u8[8192]{0}', space=vmem, size = 0x2000, scoped, tag = 'input window, operand 0']
    #allocation3 [shape = 's32[2]{0}', space=sflag, size = 0x8, scoped, tag = 'scoped memory for tpu_custom_call.1']
    #allocation4 [shape = 's32[2]{0}', space=sflag, size = 0x8, scoped, tag = 'scoped memory for tpu_custom_call.1']
    #allocation5 [shape = 'u8[102400]{0}', space=vmem, size = 0x19000, scoped, tag = 'input window, operand 1, single buffered']
    #allocation6 [shape = 's32[1]{0}', space=sflag, size = 0x4, scoped, tag = 'scoped memory for tpu_custom_call.1']
    #allocation7 [shape = 'u8[8192]{0}', space=vmem, size = 0x2000, scoped, tag = 'output window, operand 0']
    %7 = vsyncpa [#allocation3], 0
    %s8 = scalar_lea.sflag [#allocation3], 1
    %9 = vsyncpa %s8, 0
    %10 = vsyncpa [#allocation6], 0
    %11 = vsyncpa [#allocation4], 0
    %s12 = scalar_lea.sflag [#allocation4], 1
    %13 = vsyncpa %s12, 0
    loop: start=0, step=1, limit=4
    $region2: #{tpu_custom_call.1} parent=1 // loop_pre_header
      _
    $region3: #{tpu_custom_call.1} parent=1 // loop_header
      %s15 = sphi 0, %s19
      %p16 = scmp.ge.s32.totalorder %s15, 4
      %s25 = sphi 0, %s27
      %s28 = sphi 0, %s25
      %s29 = sphi 0, %s28
      %s45 = sphi 0, %s29
      %s49 = sphi 0, %s49
      %s51 = sphi 0, %s49
      %s52 = sphi 0, %s51
      %s66 = sphi 0, %s52
      %s72 = sphi 0, %s74
      %s75 = sphi 0, %s72
      %s76 = sphi 0, %s75
      %s92 = sphi 0, %s76
    $region4: #{tpu_custom_call.1} parent=1 // loop_header_branch
      %18 = sbr.rel (%p16) target = $region8
    $region5: #{tpu_custom_call.1} parent=1 // loop_body
      %s20 = ssub.s32 %s15, 1
      %s21 = ssub.s32 %s15, 2
      %s22 = sadd.s32 %s15, 1
      %s23 = ssub.s32 %s15, %s22
      %p24 = scmp.eq.s32.totalorder %s23, 0
      %s26 = sadd.s32 %s25, 1
      %s27 = scalar_select %p24, %s25, %s26
      %p30 = pneg %p24
      %p31 = scmp.eq.s32.totalorder %s15, 1
      %p32 = por %p30, %p31
      %p33 = scmp.ne.s32.totalorder %s25, %s28
      %p34 = scmp.eq.s32.totalorder %s15, 0
      %p35 = por %p33, %p34
      %p36 = scmp.ne.s32.totalorder %s25, %s28
      %p37 = scmp.eq.s32.totalorder %s20, 1
      %p38 = por %p36, %p37
      %p39 = scmp.ne.s32.totalorder %s28, %s29
      %p40 = scmp.eq.s32.totalorder %s20, 0
      %p41 = por %p39, %p40
      %p42 = scmp.ne.s32.totalorder %s28, %s29
      %p43 = scmp.eq.s32.totalorder %s21, 1
      %p44 = por %p42, %p43
      %p46 = scmp.ne.s32.totalorder %s29, %s45
      %p47 = scmp.eq.s32.totalorder %s21, 0
      %p48 = por %p46, %p47
      %s50 = sadd.s32 %s49, 1
      %p53 = scmp.eq.s32.totalorder %s15, 1
      %p54 = scmp.ne.s32.totalorder %s49, %s51
      %p55 = scmp.eq.s32.totalorder %s15, 0
      %p56 = por %p54, %p55
      %p57 = scmp.ne.s32.totalorder %s49, %s51
      %p58 = scmp.eq.s32.totalorder %s20, 1
      %p59 = por %p57, %p58
      %p60 = scmp.ne.s32.totalorder %s51, %s52
      %p61 = scmp.eq.s32.totalorder %s20, 0
      %p62 = por %p60, %p61
      %p63 = scmp.ne.s32.totalorder %s51, %s52
      %p64 = scmp.eq.s32.totalorder %s21, 1
      %p65 = por %p63, %p64
      %p67 = scmp.ne.s32.totalorder %s52, %s66
      %p68 = scmp.eq.s32.totalorder %s21, 0
      %p69 = por %p67, %p68
      %s70 = ssub.s32 %s15, %s22
      %p71 = scmp.eq.s32.totalorder %s70, 0
      %s73 = sadd.s32 %s72, 1
      %s74 = scalar_select %p71, %s72, %s73
      %p77 = pneg %p71
      %p78 = scmp.eq.s32.totalorder %s15, 1
      %p79 = por %p77, %p78
      %p80 = scmp.ne.s32.totalorder %s72, %s75
      %p81 = scmp.eq.s32.totalorder %s15, 0
      %p82 = por %p80, %p81
      %p83 = scmp.ne.s32.totalorder %s72, %s75
      %p84 = scmp.eq.s32.totalorder %s20, 1
      %p85 = por %p83, %p84
      %p86 = scmp.ne.s32.totalorder %s75, %s76
      %p87 = scmp.eq.s32.totalorder %s20, 0
      %p88 = por %p86, %p87
      %p89 = scmp.ne.s32.totalorder %s75, %s76
      %p90 = scmp.eq.s32.totalorder %s21, 1
      %p91 = por %p89, %p90
      %p93 = scmp.ne.s32.totalorder %s76, %s92
      %p94 = scmp.eq.s32.totalorder %s21, 0
      %p95 = por %p93, %p94
      %p96 = scmp.le.s32.totalorder 1, %s15
      %p97 = scmp.lt.s32.totalorder %s15, 3
      %p98 = pnand %p96, %p97
      %p99 = pneg %p98
      // Predicated region
      $region9: #{tpu_custom_call.1} parent=5 // pred_check
        _
      $region10: #{tpu_custom_call.1} parent=5 // pred_check_branch
        %101 = sbr.rel (%p98) target = $region12
      $region11: #{tpu_custom_call.1} parent=5 // pred_region
        %s102 = ssub.s32 %s15, 1
        // Predicated region
        $region13: #{tpu_custom_call.1} parent=11 // pred_check
          %p103 = pneg %p62
        $region14: #{tpu_custom_call.1} parent=11 // pred_check_branch
          %105 = sbr.rel (%p103) target = $region16
        $region15: #{tpu_custom_call.1} parent=11 // pred_region
          %s107 = ssub.s32 3200, 3200
          %108 = vsyncadd [#allocation6], %s107
          %s109 = sshll.u32 [#allocation5], 4
          %s110 = int_to_ptr.vmem [resolvable:$true] %s109
          %115 = dma.hbm_to_vmem [thread:$0]  %s1, 3200, %s110, [#allocation6], 640, 640, 40
        $region16: #{tpu_custom_call.1} parent=11 // pred_fallthru
          _
      $region12: #{tpu_custom_call.1} parent=5 // pred_fallthru
        _
      %p116 = scmp.lt.s32.totalorder %s15, 2
      // Predicated region
      $region17: #{tpu_custom_call.1} parent=5 // pred_check
        %p117 = pneg %p116
      $region18: #{tpu_custom_call.1} parent=5 // pred_check_branch
        %119 = sbr.rel (%p117) target = $region20
      $region19: #{tpu_custom_call.1} parent=5 // pred_region
        // Predicated region
        $region21: #{tpu_custom_call.1} parent=19 // pred_check
          %p120 = pneg %p35
        $region22: #{tpu_custom_call.1} parent=19 // pred_check_branch
          %122 = sbr.rel (%p120) target = $region24
        $region23: #{tpu_custom_call.1} parent=19 // pred_region
          %s123 = sand.u32 %s25, 1
          %s124 = scalar_lea.sflag [#allocation3], %s123
          %s125 = sand.u32 %s25, 1
          %s126 = smul.addr %s125, 8
          %s127 = scalar_lea.vmem [#allocation2], %s126
          %s129 = ssub.s32 128, 128
          %130 = vsyncadd %s124, %s129
          %s131 = smul.addr %s15, 128
          %s132 = scalar_lea.hbm %s0, %s131
          %s134 = sshll.u32 %s127, 4
          %s135 = int_to_ptr.vmem [resolvable:$true] %s134
          %137 = dma.hbm_to_vmem [thread:$0]  %s132, 128, %s135, %s124
        $region24: #{tpu_custom_call.1} parent=19 // pred_fallthru
          _
      $region20: #{tpu_custom_call.1} parent=5 // pred_fallthru
        _
      %p138 = scmp.le.s32.totalorder 1, %s15
      %p139 = scmp.lt.s32.totalorder %s15, 3
      %p140 = pnand %p138, %p139
      %p141 = pneg %p140
      // Predicated region
      $region25: #{tpu_custom_call.1} parent=5 // pred_check
        _
      $region26: #{tpu_custom_call.1} parent=5 // pred_check_branch
        %143 = sbr.rel (%p140) target = $region28
      $region27: #{tpu_custom_call.1} parent=5 // pred_region
        %s144 = ssub.s32 %s15, 1
        %s145 = sand.u32 %s28, 1
        %s146 = scalar_lea.sflag [#allocation3], %s145
        %s147 = sand.u32 %s28, 1
        %s148 = smul.addr %s147, 8
        %s149 = scalar_lea.vmem [#allocation2], %s148
        // Predicated region
        $region29: #{tpu_custom_call.1} parent=27 // pred_check
          %p150 = pneg %p41
        $region30: #{tpu_custom_call.1} parent=27 // pred_check_branch
          %152 = sbr.rel (%p150) target = $region32
        $region31: #{tpu_custom_call.1} parent=27 // pred_region
          %153 = dma.done %s146, 128
        $region32: #{tpu_custom_call.1} parent=27 // pred_fallthru
          _
        // Predicated region
        $region33: #{tpu_custom_call.1} parent=27 // pred_check
          %p154 = pneg %p62
        $region34: #{tpu_custom_call.1} parent=27 // pred_check_branch
          %156 = sbr.rel (%p154) target = $region36
        $region35: #{tpu_custom_call.1} parent=27 // pred_region
          %157 = dma.done [#allocation6], 3200
        $region36: #{tpu_custom_call.1} parent=27 // pred_fallthru
          _
        %s158 = sand.u32 %s28, 1
        %s159 = scalar_lea.sflag [#allocation3], %s158
        %s160 = sand.u32 %s28, 1
        %s161 = smul.addr %s160, 8
        %s162 = scalar_lea.vmem [#allocation2], %s161
        %p163 = pneg %p41
        %p164 = pneg %p38
        %p165 = pneg %p62
        %p166 = pneg %p59
        %p167 = pneg %p88
        %p168 = pneg %p85
        %s169 = sand.u32 %s75, 1
        %s170 = scalar_lea.sflag [#allocation4], %s169
        %s171 = sand.u32 %s75, 1
        %s172 = smul.addr %s171, 8
        %s173 = scalar_lea.vmem [#allocation7], %s172
        %v174 = vld [vmem:[%s149] sm:$0xff]
        %v175 = vld [vmem:[#allocation5] sm:$0xff]
        %v176 = vld [vmem:[#allocation5 + $0x8] sm:$0xff]
        %v177 = vld [vmem:[#allocation5 + $0x10] sm:$0xff]
        %v178 = vld [vmem:[#allocation5 + $0x28] sm:$0xff]
        %v179 = vld [vmem:[#allocation5 + $0x30] sm:$0xff]
        %v180 = vld [vmem:[#allocation5 + $0x38] sm:$0xff]
        %v181 = vld [vmem:[#allocation5 + $0x50] sm:$0xff]
        %v182 = vld [vmem:[#allocation5 + $0x58] sm:$0xff]
        %v183 = vld [vmem:[#allocation5 + $0x60] sm:$0xff]
        %v184 = vld [vmem:[#allocation5 + $0x78] sm:$0xff]
        %v185 = vld [vmem:[#allocation5 + $0x80] sm:$0xff]
        %v186 = vld [vmem:[#allocation5 + $0x88] sm:$0xff]
        %v187 = vld [vmem:[#allocation5 + $0x18] sm:$0xff]
        %v188 = vld [vmem:[#allocation5 + $0x40] sm:$0xff]
        %v189 = vld [vmem:[#allocation5 + $0x68] sm:$0xff]
        %v190 = vld [vmem:[#allocation5 + $0x90] sm:$0xff]
        %v191 = vld [vmem:[#allocation5 + $0x20] sm:$0xff]
        %v192 = vld [vmem:[#allocation5 + $0x48] sm:$0xff]
        %v193 = vld [vmem:[#allocation5 + $0x70] sm:$0xff]
        %v194 = vld [vmem:[#allocation5 + $0x98] sm:$0xff]
        %s195 = scalar_lea.vmem [#allocation5], 160
        %v196 = vld [vmem:[%s195] ss:$8 sm:$0x7]
        %v197 = vld [vmem:[#allocation5 + $0xa1] ss:$0 sm:$0xff]
        %vm198 = vcmask 261120
        %v200 = vsel %vm198, %v174, 0
        %202 = vmatprep.subr.mxu0 0.0
        %203 = vmatpush1.msra.mxu0 %v191
        %204 = vmatprep.subr.mxu0 0.0
        %205 = vmatpush1.msra.mxu0 %v192
        %206 = vmatprep.subr.mxu0 0.0
        %207 = vmatpush1.msra.mxu0 %v193
        %208 = vmatprep.subr.mxu0 0.0
        %209 = vmatpush1.msra.mxu0 %v194
        %210 = vmatprep.subr.mxu0 0.0
        %211 = vmatpush1.msra.mxu0 0.0
        %212 = vmatprep.subr.mxu0 0.0
        %213 = vmatpush1.msra.mxu0 0.0
        %214 = vmatprep.subr.mxu0 0.0
        %215 = vmatpush1.msra.mxu0 0.0
        %216 = vmatprep.subr.mxu0 0.0
        %217 = vmatpush1.msra.mxu0 0.0
        %218 = vmatprep.subr.mxu0 0.0
        %219 = vmatpush1.msra.mxu0 0.0
        %220 = vmatprep.subr.mxu0 0.0
        %221 = vmatpush1.msra.mxu0 0.0
        %222 = vmatprep.subr.mxu0 0.0
        %223 = vmatpush1.msra.mxu0 0.0
        %224 = vmatprep.subr.mxu0 0.0
        %225 = vmatpush1.msra.mxu0 0.0
        %226 = vmatprep.subr.mxu0 0.0
        %227 = vmatpush1.msra.mxu0 0.0
        %228 = vmatprep.subr.mxu0 0.0
        %229 = vmatpush1.msra.mxu0 0.0
        %230 = vmatprep.subr.mxu0 0.0
        %231 = vmatpush1.msra.mxu0 0.0
        %232 = vmatprep.subr.mxu0 0.0
        %233 = vmatpush1.msra.mxu0 0.0
        %234 = vmatprep.subr.mxu0 0.0
        %235 = vmatpush1.msra.mxu0 0.0
        %236 = vmatprep.subr.mxu0 0.0
        %237 = vmatpush1.msra.mxu0 0.0
        %238 = vmatprep.subr.mxu0 0.0
        %239 = vmatpush1.msra.mxu0 0.0
        %240 = vmatprep.subr.mxu0 0.0
        %241 = vmatpush1.msra.mxu0 0.0
        %242 = vmatprep.subr.mxu0 0.0
        %243 = vmatpush1.msra.mxu0 0.0
        %244 = vmatprep.subr.mxu0 0.0
        %245 = vmatpush1.msra.mxu0 0.0
        %246 = vmatprep.subr.mxu0 0.0
        %247 = vmatpush1.msra.mxu0 0.0
        %248 = vmatprep.subr.mxu0 0.0
        %249 = vmatpush1.msra.mxu0 0.0
        %250 = vmatprep.subr.mxu0 0.0
        %251 = vmatpush1.msra.mxu0 0.0
        %252 = vmatprep.subr.mxu0 0.0
        %253 = vmatpush1.msra.mxu0 0.0
        %254 = vmatprep.subr.mxu0 0.0
        %255 = vmatpush1.msra.mxu0 0.0
        %256 = vmatprep.subr.mxu0 0.0
        %257 = vmatpush1.msra.mxu0 0.0
        %258 = vmatprep.subr.mxu0 0.0
        %259 = vmatpush1.msra.mxu0 0.0
        %260 = vmatprep.subr.mxu0 0.0
        %261 = vmatpush1.msra.mxu0 0.0
        %262 = vmatprep.subr.mxu0 0.0
        %263 = vmatpush1.msra.mxu0 0.0
        %264 = vmatprep.subr.mxu0 0.0
        %265 = vmatpush1.msra.mxu0 0.0
        %266 = vmatprep.mubr.f32.mxu0 0.0
        %267 = vmatmul.mubr.f32.gmra.mrb[0].mxu0 %v200
        %v268 = vpop.f32.mrb[0].mxu0
        %v269 = vadd.f32 0.0, %v268
        %v270 = vpop.f32.mrb[0].mxu0
        %271 = vdwg.mxu0
        %v272 = vadd.f32 %v196, 0.0
        %v273 = vxor.u32 %v272, 2147483648
        %v274 = vmul.f32 %v273, 1.442695
        %v275 = vpow.pop %v274
        %v276 = vadd.f32 %v275, 1.0
        %v277 = vrcp.pop %v276
        %v278 = vmul.f32 1.0, %v277
        %v280 = vrot.slane %v272, 1
        %v282 = vxor.u32 %v280, 2147483648
        %v283 = vmul.f32 %v282, 1.442695
        %v284 = vpow.pop %v283
        %v285 = vadd.f32 %v284, 1.0
        %v286 = vrcp.pop %v285
        %v287 = vmul.f32 1.0, %v286
        %v288 = vrot.slane %v272, 2
        %v290 = vtanh.pop %v288
        %v291 = vcombine.high %v174, %v174
        %v293 = vunpack.c.l.s4 1966171168
        %v294 = vunpack.c.0.s8 %v293
        %v295 = vlaneseq
        %v296 = vshrl.u32 %v295, 7
        %v297 = vsub.s32 %v294, %v296
        %v298 = vrot.slane %v291, %v297
        %v299 = vcombine.high %v298, %v298
        %v301 = vunpack.c.l.s4 1966171168
        %v302 = vunpack.c.0.s8 %v301
        %v303 = vlaneseq
        %v304 = vshrl.u32 %v303, 7
        %v305 = vsub.s32 %v302, %v304
        %v306 = vrot.slane %v299, %v305
        %v307 = vcombine.high %v306, %v306
        %v309 = vmul.f32 %v287, %v307
        %v310 = vmul.f32 %v278, %v290
        %v311 = vadd.f32 %v309, %v310
        %v313 = vsel %vm198, %v311, 0
        %315 = vmatprep.subr.mxu0 %v176
        %316 = vmatpush1.msra.mxu0 %v175
        %317 = vmatprep.subr.mxu0 %v179
        %318 = vmatpush1.msra.mxu0 %v178
        %319 = vmatprep.subr.mxu0 %v182
        %320 = vmatpush1.msra.mxu0 %v181
        %321 = vmatprep.subr.mxu0 %v185
        %322 = vmatpush1.msra.mxu0 %v184
        %323 = vmatprep.subr.mxu0 0.0
        %324 = vmatpush1.msra.mxu0 0.0
        %325 = vmatprep.subr.mxu0 0.0
        %326 = vmatpush1.msra.mxu0 0.0
        %327 = vmatprep.subr.mxu0 0.0
        %328 = vmatpush1.msra.mxu0 0.0
        %329 = vmatprep.subr.mxu0 0.0
        %330 = vmatpush1.msra.mxu0 0.0
        %331 = vmatprep.subr.mxu0 0.0
        %332 = vmatpush1.msra.mxu0 0.0
        %333 = vmatprep.subr.mxu0 0.0
        %334 = vmatpush1.msra.mxu0 0.0
        %335 = vmatprep.subr.mxu0 0.0
        %336 = vmatpush1.msra.mxu0 0.0
        %337 = vmatprep.subr.mxu0 0.0
        %338 = vmatpush1.msra.mxu0 0.0
        %339 = vmatprep.subr.mxu0 0.0
        %340 = vmatpush1.msra.mxu0 0.0
        %341 = vmatprep.subr.mxu0 0.0
        %342 = vmatpush1.msra.mxu0 0.0
        %343 = vmatprep.subr.mxu0 0.0
        %344 = vmatpush1.msra.mxu0 0.0
        %345 = vmatprep.subr.mxu0 0.0
        %346 = vmatpush1.msra.mxu0 0.0
        %347 = vmatprep.subr.mxu0 0.0
        %348 = vmatpush1.msra.mxu0 0.0
        %349 = vmatprep.subr.mxu0 0.0
        %350 = vmatpush1.msra.mxu0 0.0
        %351 = vmatprep.subr.mxu0 0.0
        %352 = vmatpush1.msra.mxu0 0.0
        %353 = vmatprep.subr.mxu0 0.0
        %354 = vmatpush1.msra.mxu0 0.0
        %355 = vmatprep.subr.mxu0 0.0
        %356 = vmatpush1.msra.mxu0 0.0
        %357 = vmatprep.subr.mxu0 0.0
        %358 = vmatpush1.msra.mxu0 0.0
        %359 = vmatprep.subr.mxu0 0.0
        %360 = vmatpush1.msra.mxu0 0.0
        %361 = vmatprep.subr.mxu0 0.0
        %362 = vmatpush1.msra.mxu0 0.0
        %363 = vmatprep.subr.mxu0 0.0
        %364 = vmatpush1.msra.mxu0 0.0
        %365 = vmatprep.subr.mxu0 0.0
        %366 = vmatpush1.msra.mxu0 0.0
        %367 = vmatprep.subr.mxu0 0.0
        %368 = vmatpush1.msra.mxu0 0.0
        %369 = vmatprep.subr.mxu0 0.0
        %370 = vmatpush1.msra.mxu0 0.0
        %371 = vmatprep.subr.mxu0 0.0
        %372 = vmatpush1.msra.mxu0 0.0
        %373 = vmatprep.subr.mxu0 0.0
        %374 = vmatpush1.msra.mxu0 0.0
        %375 = vmatprep.subr.mxu0 0.0
        %376 = vmatpush1.msra.mxu0 0.0
        %377 = vmatprep.subr.mxu0 0.0
        %378 = vmatpush1.msra.mxu0 0.0
        %379 = vmatprep.mubr.f32.mxu0 0.0
        %380 = vmatmul.mubr.f32.gmra.mrb[0].mxu0 %v313
        %v381 = vpop.f32.mrb[0].mxu0
        %v382 = vadd.f32 0.0, %v381
        %v383 = vpop.f32.mrb[0].mxu0
        %v384 = vadd.f32 0.0, %v383
        %385 = vdwg.mxu0
        %386 = vmatprep.subr.mxu0 0.0
        %387 = vmatpush1.msra.mxu0 %v177
        %388 = vmatprep.subr.mxu0 0.0
        %389 = vmatpush1.msra.mxu0 %v180
        %390 = vmatprep.subr.mxu0 0.0
        %391 = vmatpush1.msra.mxu0 %v183
        %392 = vmatprep.subr.mxu0 0.0
        %393 = vmatpush1.msra.mxu0 %v186
        %394 = vmatprep.subr.mxu0 0.0
        %395 = vmatpush1.msra.mxu0 0.0
        %396 = vmatprep.subr.mxu0 0.0
        %397 = vmatpush1.msra.mxu0 0.0
        %398 = vmatprep.subr.mxu0 0.0
        %399 = vmatpush1.msra.mxu0 0.0
        %400 = vmatprep.subr.mxu0 0.0
        %401 = vmatpush1.msra.mxu0 0.0
        %402 = vmatprep.subr.mxu0 0.0
        %403 = vmatpush1.msra.mxu0 0.0
        %404 = vmatprep.subr.mxu0 0.0
        %405 = vmatpush1.msra.mxu0 0.0
        %406 = vmatprep.subr.mxu0 0.0
        %407 = vmatpush1.msra.mxu0 0.0
        %408 = vmatprep.subr.mxu0 0.0
        %409 = vmatpush1.msra.mxu0 0.0
        %410 = vmatprep.subr.mxu0 0.0
        %411 = vmatpush1.msra.mxu0 0.0
        %412 = vmatprep.subr.mxu0 0.0
        %413 = vmatpush1.msra.mxu0 0.0
        %414 = vmatprep.subr.mxu0 0.0
        %415 = vmatpush1.msra.mxu0 0.0
        %416 = vmatprep.subr.mxu0 0.0
        %417 = vmatpush1.msra.mxu0 0.0
        %418 = vmatprep.subr.mxu0 0.0
        %419 = vmatpush1.msra.mxu0 0.0
        %420 = vmatprep.subr.mxu0 0.0
        %421 = vmatpush1.msra.mxu0 0.0
        %422 = vmatprep.subr.mxu0 0.0
        %423 = vmatpush1.msra.mxu0 0.0
        %424 = vmatprep.subr.mxu0 0.0
        %425 = vmatpush1.msra.mxu0 0.0
        %426 = vmatprep.subr.mxu0 0.0
        %427 = vmatpush1.msra.mxu0 0.0
        %428 = vmatprep.subr.mxu0 0.0
        %429 = vmatpush1.msra.mxu0 0.0
        %430 = vmatprep.subr.mxu0 0.0
        %431 = vmatpush1.msra.mxu0 0.0
        %432 = vmatprep.subr.mxu0 0.0
        %433 = vmatpush1.msra.mxu0 0.0
        %434 = vmatprep.subr.mxu0 0.0
        %435 = vmatpush1.msra.mxu0 0.0
        %436 = vmatprep.subr.mxu0 0.0
        %437 = vmatpush1.msra.mxu0 0.0
        %438 = vmatprep.subr.mxu0 0.0
        %439 = vmatpush1.msra.mxu0 0.0
        %440 = vmatprep.subr.mxu0 0.0
        %441 = vmatpush1.msra.mxu0 0.0
        %442 = vmatprep.subr.mxu0 0.0
        %443 = vmatpush1.msra.mxu0 0.0
        %444 = vmatprep.subr.mxu0 0.0
        %445 = vmatpush1.msra.mxu0 0.0
        %446 = vmatprep.subr.mxu0 0.0
        %447 = vmatpush1.msra.mxu0 0.0
        %448 = vmatprep.subr.mxu0 0.0
        %449 = vmatpush1.msra.mxu0 0.0
        %450 = vmatprep.mubr.f32.mxu0 0.0
        %451 = vmatmul.mubr.f32.gmra.mrb[0].mxu0 %v313
        %v452 = vpop.f32.mrb[0].mxu0
        %v453 = vadd.f32 0.0, %v452
        %v454 = vpop.f32.mrb[0].mxu0
        %455 = vdwg.mxu0
        %v459 = vcombine.low %v382, %v384
        %v461 = vunpack.c.l.s4 1966171168
        %v462 = vunpack.c.0.s8 %v461
        %v463 = vlaneseq
        %v464 = vshrl.u32 %v463, 7
        %v465 = vsub.s32 %v462, %v464
        %v466 = vrot.slane %v459, %v465
        %v468 = vunpack.c.l.s4 1966171168
        %v469 = vunpack.c.0.s8 %v468
        %v470 = vlaneseq
        %v471 = vshrl.u32 %v470, 7
        %v472 = vsub.s32 %v469, %v471
        %v473 = vrot.slane %v453, %v472
        %v474 = vcombine.low %v466, %v473
        %v476 = vunpack.c.l.s4 1966171168
        %v477 = vunpack.c.0.s8 %v476
        %v478 = vlaneseq
        %v479 = vshrl.u32 %v478, 7
        %v480 = vsub.s32 %v477, %v479
        %v481 = vrot.slane %v474, %v480
        %v483 = vadd.f32 %v196, %v481
        %v484 = vxor.u32 %v483, 2147483648
        %v485 = vmul.f32 %v484, 1.442695
        %v486 = vpow.pop %v485
        %v487 = vadd.f32 %v486, 1.0
        %v488 = vrcp.pop %v487
        %v489 = vmul.f32 1.0, %v488
        %v491 = vrot.slane %v483, 1
        %v493 = vxor.u32 %v491, 2147483648
        %v494 = vmul.f32 %v493, 1.442695
        %v495 = vpow.pop %v494
        %v496 = vadd.f32 %v495, 1.0
        %v497 = vrcp.pop %v496
        %v498 = vmul.f32 1.0, %v497
        %v499 = vrot.slane %v483, 2
        %v501 = vtanh.pop %v499
        %v502 = vmul.f32 %v498, %v307
        %v503 = vmul.f32 %v489, %v501
        %v504 = vadd.f32 %v502, %v503
        %v506 = vsel %vm198, %v504, 0
        %508 = vmatprep.subr.mxu0 %v176
        %509 = vmatpush1.msra.mxu0 %v175
        %510 = vmatprep.subr.mxu0 %v179
        %511 = vmatpush1.msra.mxu0 %v178
        %512 = vmatprep.subr.mxu0 %v182
        %513 = vmatpush1.msra.mxu0 %v181
        %514 = vmatprep.subr.mxu0 %v185
        %515 = vmatpush1.msra.mxu0 %v184
        %516 = vmatprep.subr.mxu0 0.0
        %517 = vmatpush1.msra.mxu0 0.0
        %518 = vmatprep.subr.mxu0 0.0
        %519 = vmatpush1.msra.mxu0 0.0
        %520 = vmatprep.subr.mxu0 0.0
        %521 = vmatpush1.msra.mxu0 0.0
        %522 = vmatprep.subr.mxu0 0.0
        %523 = vmatpush1.msra.mxu0 0.0
        %524 = vmatprep.subr.mxu0 0.0
        %525 = vmatpush1.msra.mxu0 0.0
        %526 = vmatprep.subr.mxu0 0.0
        %527 = vmatpush1.msra.mxu0 0.0
        %528 = vmatprep.subr.mxu0 0.0
        %529 = vmatpush1.msra.mxu0 0.0
        %530 = vmatprep.subr.mxu0 0.0
        %531 = vmatpush1.msra.mxu0 0.0
        %532 = vmatprep.subr.mxu0 0.0
        %533 = vmatpush1.msra.mxu0 0.0
        %534 = vmatprep.subr.mxu0 0.0
        %535 = vmatpush1.msra.mxu0 0.0
        %536 = vmatprep.subr.mxu0 0.0
        %537 = vmatpush1.msra.mxu0 0.0
        %538 = vmatprep.subr.mxu0 0.0
        %539 = vmatpush1.msra.mxu0 0.0
        %540 = vmatprep.subr.mxu0 0.0
        %541 = vmatpush1.msra.mxu0 0.0
        %542 = vmatprep.subr.mxu0 0.0
        %543 = vmatpush1.msra.mxu0 0.0
        %544 = vmatprep.subr.mxu0 0.0
        %545 = vmatpush1.msra.mxu0 0.0
        %546 = vmatprep.subr.mxu0 0.0
        %547 = vmatpush1.msra.mxu0 0.0
        %548 = vmatprep.subr.mxu0 0.0
        %549 = vmatpush1.msra.mxu0 0.0
        %550 = vmatprep.subr.mxu0 0.0
        %551 = vmatpush1.msra.mxu0 0.0
        %552 = vmatprep.subr.mxu0 0.0
        %553 = vmatpush1.msra.mxu0 0.0
        %554 = vmatprep.subr.mxu0 0.0
        %555 = vmatpush1.msra.mxu0 0.0
        %556 = vmatprep.subr.mxu0 0.0
        %557 = vmatpush1.msra.mxu0 0.0
        %558 = vmatprep.subr.mxu0 0.0
        %559 = vmatpush1.msra.mxu0 0.0
        %560 = vmatprep.subr.mxu0 0.0
        %561 = vmatpush1.msra.mxu0 0.0
        %562 = vmatprep.subr.mxu0 0.0
        %563 = vmatpush1.msra.mxu0 0.0
        %564 = vmatprep.subr.mxu0 0.0
        %565 = vmatpush1.msra.mxu0 0.0
        %566 = vmatprep.subr.mxu0 0.0
        %567 = vmatpush1.msra.mxu0 0.0
        %568 = vmatprep.subr.mxu0 0.0
        %569 = vmatpush1.msra.mxu0 0.0
        %570 = vmatprep.subr.mxu0 0.0
        %571 = vmatpush1.msra.mxu0 0.0
        %572 = vmatprep.mubr.f32.mxu0 0.0
        %573 = vmatmul.mubr.f32.gmra.mrb[0].mxu0 %v506
        %v574 = vpop.f32.mrb[0].mxu0
        %v575 = vadd.f32 0.0, %v574
        %v576 = vpop.f32.mrb[0].mxu0
        %v577 = vadd.f32 0.0, %v576
        %578 = vdwg.mxu0
        %579 = vmatprep.subr.mxu0 0.0
        %580 = vmatpush1.msra.mxu0 %v177
        %581 = vmatprep.subr.mxu0 0.0
        %582 = vmatpush1.msra.mxu0 %v180
        %583 = vmatprep.subr.mxu0 0.0
        %584 = vmatpush1.msra.mxu0 %v183
        %585 = vmatprep.subr.mxu0 0.0
        %586 = vmatpush1.msra.mxu0 %v186
        %587 = vmatprep.subr.mxu0 0.0
        %588 = vmatpush1.msra.mxu0 0.0
        %589 = vmatprep.subr.mxu0 0.0
        %590 = vmatpush1.msra.mxu0 0.0
        %591 = vmatprep.subr.mxu0 0.0
        %592 = vmatpush1.msra.mxu0 0.0
        %593 = vmatprep.subr.mxu0 0.0
        %594 = vmatpush1.msra.mxu0 0.0
        %595 = vmatprep.subr.mxu0 0.0
        %596 = vmatpush1.msra.mxu0 0.0
        %597 = vmatprep.subr.mxu0 0.0
        %598 = vmatpush1.msra.mxu0 0.0
        %599 = vmatprep.subr.mxu0 0.0
        %600 = vmatpush1.msra.mxu0 0.0
        %601 = vmatprep.subr.mxu0 0.0
        %602 = vmatpush1.msra.mxu0 0.0
        %603 = vmatprep.subr.mxu0 0.0
        %604 = vmatpush1.msra.mxu0 0.0
        %605 = vmatprep.subr.mxu0 0.0
        %606 = vmatpush1.msra.mxu0 0.0
        %607 = vmatprep.subr.mxu0 0.0
        %608 = vmatpush1.msra.mxu0 0.0
        %609 = vmatprep.subr.mxu0 0.0
        %610 = vmatpush1.msra.mxu0 0.0
        %611 = vmatprep.subr.mxu0 0.0
        %612 = vmatpush1.msra.mxu0 0.0
        %613 = vmatprep.subr.mxu0 0.0
        %614 = vmatpush1.msra.mxu0 0.0
        %615 = vmatprep.subr.mxu0 0.0
        %616 = vmatpush1.msra.mxu0 0.0
        %617 = vmatprep.subr.mxu0 0.0
        %618 = vmatpush1.msra.mxu0 0.0
        %619 = vmatprep.subr.mxu0 0.0
        %620 = vmatpush1.msra.mxu0 0.0
        %621 = vmatprep.subr.mxu0 0.0
        %622 = vmatpush1.msra.mxu0 0.0
        %623 = vmatprep.subr.mxu0 0.0
        %624 = vmatpush1.msra.mxu0 0.0
        %625 = vmatprep.subr.mxu0 0.0
        %626 = vmatpush1.msra.mxu0 0.0
        %627 = vmatprep.subr.mxu0 0.0
        %628 = vmatpush1.msra.mxu0 0.0
        %629 = vmatprep.subr.mxu0 0.0
        %630 = vmatpush1.msra.mxu0 0.0
        %631 = vmatprep.subr.mxu0 0.0
        %632 = vmatpush1.msra.mxu0 0.0
        %633 = vmatprep.subr.mxu0 0.0
        %634 = vmatpush1.msra.mxu0 0.0
        %635 = vmatprep.subr.mxu0 0.0
        %636 = vmatpush1.msra.mxu0 0.0
        %637 = vmatprep.subr.mxu0 0.0
        %638 = vmatpush1.msra.mxu0 0.0
        %639 = vmatprep.subr.mxu0 0.0
        %640 = vmatpush1.msra.mxu0 0.0
        %641 = vmatprep.subr.mxu0 0.0
        %642 = vmatpush1.msra.mxu0 0.0
        %643 = vmatprep.mubr.f32.mxu0 0.0
        %644 = vmatmul.mubr.f32.gmra.mrb[0].mxu0 %v506
        %v645 = vpop.f32.mrb[0].mxu0
        %v646 = vadd.f32 0.0, %v645
        %v647 = vpop.f32.mrb[0].mxu0
        %648 = vdwg.mxu0
        %v652 = vcombine.low %v575, %v577
        %v654 = vunpack.c.l.s4 1966171168
        %v655 = vunpack.c.0.s8 %v654
        %v656 = vlaneseq
        %v657 = vshrl.u32 %v656, 7
        %v658 = vsub.s32 %v655, %v657
        %v659 = vrot.slane %v652, %v658
        %v661 = vunpack.c.l.s4 1966171168
        %v662 = vunpack.c.0.s8 %v661
        %v663 = vlaneseq
        %v664 = vshrl.u32 %v663, 7
        %v665 = vsub.s32 %v662, %v664
        %v666 = vrot.slane %v646, %v665
        %v667 = vcombine.low %v659, %v666
        %v669 = vunpack.c.l.s4 1966171168
        %v670 = vunpack.c.0.s8 %v669
        %v671 = vlaneseq
        %v672 = vshrl.u32 %v671, 7
        %v673 = vsub.s32 %v670, %v672
        %v674 = vrot.slane %v667, %v673
        %v676 = vadd.f32 %v196, %v674
        %v677 = vxor.u32 %v676, 2147483648
        %v678 = vmul.f32 %v677, 1.442695
        %v679 = vpow.pop %v678
        %v680 = vadd.f32 %v679, 1.0
        %v681 = vrcp.pop %v680
        %v682 = vmul.f32 1.0, %v681
        %v684 = vrot.slane %v676, 1
        %v686 = vxor.u32 %v684, 2147483648
        %v687 = vmul.f32 %v686, 1.442695
        %v688 = vpow.pop %v687
        %v689 = vadd.f32 %v688, 1.0
        %v690 = vrcp.pop %v689
        %v691 = vmul.f32 1.0, %v690
        %v692 = vrot.slane %v676, 2
        %v694 = vtanh.pop %v692
        %v695 = vmul.f32 %v691, %v307
        %v696 = vmul.f32 %v682, %v694
        %v697 = vadd.f32 %v695, %v696
        %v699 = vsel %vm198, %v697, 0
        %701 = vmatprep.subr.mxu0 %v176
        %702 = vmatpush1.msra.mxu0 %v175
        %703 = vmatprep.subr.mxu0 %v179
        %704 = vmatpush1.msra.mxu0 %v178
        %705 = vmatprep.subr.mxu0 %v182
        %706 = vmatpush1.msra.mxu0 %v181
        %707 = vmatprep.subr.mxu0 %v185
        %708 = vmatpush1.msra.mxu0 %v184
        %709 = vmatprep.subr.mxu0 0.0
        %710 = vmatpush1.msra.mxu0 0.0
        %711 = vmatprep.subr.mxu0 0.0
        %712 = vmatpush1.msra.mxu0 0.0
        %713 = vmatprep.subr.mxu0 0.0
        %714 = vmatpush1.msra.mxu0 0.0
        %715 = vmatprep.subr.mxu0 0.0
        %716 = vmatpush1.msra.mxu0 0.0
        %717 = vmatprep.subr.mxu0 0.0
        %718 = vmatpush1.msra.mxu0 0.0
        %719 = vmatprep.subr.mxu0 0.0
        %720 = vmatpush1.msra.mxu0 0.0
        %721 = vmatprep.subr.mxu0 0.0
        %722 = vmatpush1.msra.mxu0 0.0
        %723 = vmatprep.subr.mxu0 0.0
        %724 = vmatpush1.msra.mxu0 0.0
        %725 = vmatprep.subr.mxu0 0.0
        %726 = vmatpush1.msra.mxu0 0.0
        %727 = vmatprep.subr.mxu0 0.0
        %728 = vmatpush1.msra.mxu0 0.0
        %729 = vmatprep.subr.mxu0 0.0
        %730 = vmatpush1.msra.mxu0 0.0
        %731 = vmatprep.subr.mxu0 0.0
        %732 = vmatpush1.msra.mxu0 0.0
        %733 = vmatprep.subr.mxu0 0.0
        %734 = vmatpush1.msra.mxu0 0.0
        %735 = vmatprep.subr.mxu0 0.0
        %736 = vmatpush1.msra.mxu0 0.0
        %737 = vmatprep.subr.mxu0 0.0
        %738 = vmatpush1.msra.mxu0 0.0
        %739 = vmatprep.subr.mxu0 0.0
        %740 = vmatpush1.msra.mxu0 0.0
        %741 = vmatprep.subr.mxu0 0.0
        %742 = vmatpush1.msra.mxu0 0.0
        %743 = vmatprep.subr.mxu0 0.0
        %744 = vmatpush1.msra.mxu0 0.0
        %745 = vmatprep.subr.mxu0 0.0
        %746 = vmatpush1.msra.mxu0 0.0
        %747 = vmatprep.subr.mxu0 0.0
        %748 = vmatpush1.msra.mxu0 0.0
        %749 = vmatprep.subr.mxu0 0.0
        %750 = vmatpush1.msra.mxu0 0.0
        %751 = vmatprep.subr.mxu0 0.0
        %752 = vmatpush1.msra.mxu0 0.0
        %753 = vmatprep.subr.mxu0 0.0
        %754 = vmatpush1.msra.mxu0 0.0
        %755 = vmatprep.subr.mxu0 0.0
        %756 = vmatpush1.msra.mxu0 0.0
        %757 = vmatprep.subr.mxu0 0.0
        %758 = vmatpush1.msra.mxu0 0.0
        %759 = vmatprep.subr.mxu0 0.0
        %760 = vmatpush1.msra.mxu0 0.0
        %761 = vmatprep.subr.mxu0 0.0
        %762 = vmatpush1.msra.mxu0 0.0
        %763 = vmatprep.subr.mxu0 0.0
        %764 = vmatpush1.msra.mxu0 0.0
        %765 = vmatprep.mubr.f32.mxu0 0.0
        %766 = vmatmul.mubr.f32.gmra.mrb[0].mxu0 %v699
        %v767 = vpop.f32.mrb[0].mxu0
        %v768 = vadd.f32 0.0, %v767
        %v769 = vpop.f32.mrb[0].mxu0
        %v770 = vadd.f32 0.0, %v769
        %771 = vdwg.mxu0
        %772 = vmatprep.subr.mxu0 0.0
        %773 = vmatpush1.msra.mxu0 %v177
        %774 = vmatprep.subr.mxu0 0.0
        %775 = vmatpush1.msra.mxu0 %v180
        %776 = vmatprep.subr.mxu0 0.0
        %777 = vmatpush1.msra.mxu0 %v183
        %778 = vmatprep.subr.mxu0 0.0
        %779 = vmatpush1.msra.mxu0 %v186
        %780 = vmatprep.subr.mxu0 0.0
        %781 = vmatpush1.msra.mxu0 0.0
        %782 = vmatprep.subr.mxu0 0.0
        %783 = vmatpush1.msra.mxu0 0.0
        %784 = vmatprep.subr.mxu0 0.0
        %785 = vmatpush1.msra.mxu0 0.0
        %786 = vmatprep.subr.mxu0 0.0
        %787 = vmatpush1.msra.mxu0 0.0
        %788 = vmatprep.subr.mxu0 0.0
        %789 = vmatpush1.msra.mxu0 0.0
        %790 = vmatprep.subr.mxu0 0.0
        %791 = vmatpush1.msra.mxu0 0.0
        %792 = vmatprep.subr.mxu0 0.0
        %793 = vmatpush1.msra.mxu0 0.0
        %794 = vmatprep.subr.mxu0 0.0
        %795 = vmatpush1.msra.mxu0 0.0
        %796 = vmatprep.subr.mxu0 0.0
        %797 = vmatpush1.msra.mxu0 0.0
        %798 = vmatprep.subr.mxu0 0.0
        %799 = vmatpush1.msra.mxu0 0.0
        %800 = vmatprep.subr.mxu0 0.0
        %801 = vmatpush1.msra.mxu0 0.0
        %802 = vmatprep.subr.mxu0 0.0
        %803 = vmatpush1.msra.mxu0 0.0
        %804 = vmatprep.subr.mxu0 0.0
        %805 = vmatpush1.msra.mxu0 0.0
        %806 = vmatprep.subr.mxu0 0.0
        %807 = vmatpush1.msra.mxu0 0.0
        %808 = vmatprep.subr.mxu0 0.0
        %809 = vmatpush1.msra.mxu0 0.0
        %810 = vmatprep.subr.mxu0 0.0
        %811 = vmatpush1.msra.mxu0 0.0
        %812 = vmatprep.subr.mxu0 0.0
        %813 = vmatpush1.msra.mxu0 0.0
        %814 = vmatprep.subr.mxu0 0.0
        %815 = vmatpush1.msra.mxu0 0.0
        %816 = vmatprep.subr.mxu0 0.0
        %817 = vmatpush1.msra.mxu0 0.0
        %818 = vmatprep.subr.mxu0 0.0
        %819 = vmatpush1.msra.mxu0 0.0
        %820 = vmatprep.subr.mxu0 0.0
        %821 = vmatpush1.msra.mxu0 0.0
        %822 = vmatprep.subr.mxu0 0.0
        %823 = vmatpush1.msra.mxu0 0.0
        %824 = vmatprep.subr.mxu0 0.0
        %825 = vmatpush1.msra.mxu0 0.0
        %826 = vmatprep.subr.mxu0 0.0
        %827 = vmatpush1.msra.mxu0 0.0
        %828 = vmatprep.subr.mxu0 0.0
        %829 = vmatpush1.msra.mxu0 0.0
        %830 = vmatprep.subr.mxu0 0.0
        %831 = vmatpush1.msra.mxu0 0.0
        %832 = vmatprep.subr.mxu0 0.0
        %833 = vmatpush1.msra.mxu0 0.0
        %834 = vmatprep.subr.mxu0 0.0
        %835 = vmatpush1.msra.mxu0 0.0
        %836 = vmatprep.mubr.f32.mxu0 0.0
        %837 = vmatmul.mubr.f32.gmra.mrb[0].mxu0 %v699
        %v838 = vpop.f32.mrb[0].mxu0
        %v839 = vadd.f32 0.0, %v838
        %v840 = vpop.f32.mrb[0].mxu0
        %841 = vdwg.mxu0
        %v845 = vcombine.low %v768, %v770
        %v847 = vunpack.c.l.s4 1966171168
        %v848 = vunpack.c.0.s8 %v847
        %v849 = vlaneseq
        %v850 = vshrl.u32 %v849, 7
        %v851 = vsub.s32 %v848, %v850
        %v852 = vrot.slane %v845, %v851
        %v854 = vunpack.c.l.s4 1966171168
        %v855 = vunpack.c.0.s8 %v854
        %v856 = vlaneseq
        %v857 = vshrl.u32 %v856, 7
        %v858 = vsub.s32 %v855, %v857
        %v859 = vrot.slane %v839, %v858
        %v860 = vcombine.low %v852, %v859
        %v862 = vunpack.c.l.s4 1966171168
        %v863 = vunpack.c.0.s8 %v862
        %v864 = vlaneseq
        %v865 = vshrl.u32 %v864, 7
        %v866 = vsub.s32 %v863, %v865
        %v867 = vrot.slane %v860, %v866
        %v869 = vadd.f32 %v196, %v867
        %v870 = vxor.u32 %v869, 2147483648
        %v871 = vmul.f32 %v870, 1.442695
        %v872 = vpow.pop %v871
        %v873 = vadd.f32 %v872, 1.0
        %v874 = vrcp.pop %v873
        %v875 = vmul.f32 1.0, %v874
        %v877 = vrot.slane %v869, 1
        %v879 = vxor.u32 %v877, 2147483648
        %v880 = vmul.f32 %v879, 1.442695
        %v881 = vpow.pop %v880
        %v882 = vadd.f32 %v881, 1.0
        %v883 = vrcp.pop %v882
        %v884 = vmul.f32 1.0, %v883
        %v885 = vrot.slane %v869, 2
        %v887 = vtanh.pop %v885
        %v888 = vmul.f32 %v884, %v307
        %v889 = vmul.f32 %v875, %v887
        %v890 = vadd.f32 %v888, %v889
        %v892 = vsel %vm198, %v890, 0
        %894 = vmatprep.subr.mxu0 %v176
        %895 = vmatpush1.msra.mxu0 %v175
        %896 = vmatprep.subr.mxu0 %v179
        %897 = vmatpush1.msra.mxu0 %v178
        %898 = vmatprep.subr.mxu0 %v182
        %899 = vmatpush1.msra.mxu0 %v181
        %900 = vmatprep.subr.mxu0 %v185
        %901 = vmatpush1.msra.mxu0 %v184
        %902 = vmatprep.subr.mxu0 0.0
        %903 = vmatpush1.msra.mxu0 0.0
        %904 = vmatprep.subr.mxu0 0.0
        %905 = vmatpush1.msra.mxu0 0.0
        %906 = vmatprep.subr.mxu0 0.0
        %907 = vmatpush1.msra.mxu0 0.0
        %908 = vmatprep.subr.mxu0 0.0
        %909 = vmatpush1.msra.mxu0 0.0
        %910 = vmatprep.subr.mxu0 0.0
        %911 = vmatpush1.msra.mxu0 0.0
        %912 = vmatprep.subr.mxu0 0.0
        %913 = vmatpush1.msra.mxu0 0.0
        %914 = vmatprep.subr.mxu0 0.0
        %915 = vmatpush1.msra.mxu0 0.0
        %916 = vmatprep.subr.mxu0 0.0
        %917 = vmatpush1.msra.mxu0 0.0
        %918 = vmatprep.subr.mxu0 0.0
        %919 = vmatpush1.msra.mxu0 0.0
        %920 = vmatprep.subr.mxu0 0.0
        %921 = vmatpush1.msra.mxu0 0.0
        %922 = vmatprep.subr.mxu0 0.0
        %923 = vmatpush1.msra.mxu0 0.0
        %924 = vmatprep.subr.mxu0 0.0
        %925 = vmatpush1.msra.mxu0 0.0
        %926 = vmatprep.subr.mxu0 0.0
        %927 = vmatpush1.msra.mxu0 0.0
        %928 = vmatprep.subr.mxu0 0.0
        %929 = vmatpush1.msra.mxu0 0.0
        %930 = vmatprep.subr.mxu0 0.0
        %931 = vmatpush1.msra.mxu0 0.0
        %932 = vmatprep.subr.mxu0 0.0
        %933 = vmatpush1.msra.mxu0 0.0
        %934 = vmatprep.subr.mxu0 0.0
        %935 = vmatpush1.msra.mxu0 0.0
        %936 = vmatprep.subr.mxu0 0.0
        %937 = vmatpush1.msra.mxu0 0.0
        %938 = vmatprep.subr.mxu0 0.0
        %939 = vmatpush1.msra.mxu0 0.0
        %940 = vmatprep.subr.mxu0 0.0
        %941 = vmatpush1.msra.mxu0 0.0
        %942 = vmatprep.subr.mxu0 0.0
        %943 = vmatpush1.msra.mxu0 0.0
        %944 = vmatprep.subr.mxu0 0.0
        %945 = vmatpush1.msra.mxu0 0.0
        %946 = vmatprep.subr.mxu0 0.0
        %947 = vmatpush1.msra.mxu0 0.0
        %948 = vmatprep.subr.mxu0 0.0
        %949 = vmatpush1.msra.mxu0 0.0
        %950 = vmatprep.subr.mxu0 0.0
        %951 = vmatpush1.msra.mxu0 0.0
        %952 = vmatprep.subr.mxu0 0.0
        %953 = vmatpush1.msra.mxu0 0.0
        %954 = vmatprep.subr.mxu0 0.0
        %955 = vmatpush1.msra.mxu0 0.0
        %956 = vmatprep.subr.mxu0 0.0
        %957 = vmatpush1.msra.mxu0 0.0
        %958 = vmatprep.mubr.f32.mxu0 0.0
        %959 = vmatmul.mubr.f32.gmra.mrb[0].mxu0 %v892
        %v960 = vpop.f32.mrb[0].mxu0
        %v961 = vadd.f32 0.0, %v960
        %v962 = vpop.f32.mrb[0].mxu0
        %v963 = vadd.f32 0.0, %v962
        %964 = vdwg.mxu0
        %965 = vmatprep.subr.mxu0 0.0
        %966 = vmatpush1.msra.mxu0 %v177
        %967 = vmatprep.subr.mxu0 0.0
        %968 = vmatpush1.msra.mxu0 %v180
        %969 = vmatprep.subr.mxu0 0.0
        %970 = vmatpush1.msra.mxu0 %v183
        %971 = vmatprep.subr.mxu0 0.0
        %972 = vmatpush1.msra.mxu0 %v186
        %973 = vmatprep.subr.mxu0 0.0
        %974 = vmatpush1.msra.mxu0 0.0
        %975 = vmatprep.subr.mxu0 0.0
        %976 = vmatpush1.msra.mxu0 0.0
        %977 = vmatprep.subr.mxu0 0.0
        %978 = vmatpush1.msra.mxu0 0.0
        %979 = vmatprep.subr.mxu0 0.0
        %980 = vmatpush1.msra.mxu0 0.0
        %981 = vmatprep.subr.mxu0 0.0
        %982 = vmatpush1.msra.mxu0 0.0
        %983 = vmatprep.subr.mxu0 0.0
        %984 = vmatpush1.msra.mxu0 0.0
        %985 = vmatprep.subr.mxu0 0.0
        %986 = vmatpush1.msra.mxu0 0.0
        %987 = vmatprep.subr.mxu0 0.0
        %988 = vmatpush1.msra.mxu0 0.0
        %989 = vmatprep.subr.mxu0 0.0
        %990 = vmatpush1.msra.mxu0 0.0
        %991 = vmatprep.subr.mxu0 0.0
        %992 = vmatpush1.msra.mxu0 0.0
        %993 = vmatprep.subr.mxu0 0.0
        %994 = vmatpush1.msra.mxu0 0.0
        %995 = vmatprep.subr.mxu0 0.0
        %996 = vmatpush1.msra.mxu0 0.0
        %997 = vmatprep.subr.mxu0 0.0
        %998 = vmatpush1.msra.mxu0 0.0
        %999 = vmatprep.subr.mxu0 0.0
        %1000 = vmatpush1.msra.mxu0 0.0
        %1001 = vmatprep.subr.mxu0 0.0
        %1002 = vmatpush1.msra.mxu0 0.0
        %1003 = vmatprep.subr.mxu0 0.0
        %1004 = vmatpush1.msra.mxu0 0.0
        %1005 = vmatprep.subr.mxu0 0.0
        %1006 = vmatpush1.msra.mxu0 0.0
        %1007 = vmatprep.subr.mxu0 0.0
        %1008 = vmatpush1.msra.mxu0 0.0
        %1009 = vmatprep.subr.mxu0 0.0
        %1010 = vmatpush1.msra.mxu0 0.0
        %1011 = vmatprep.subr.mxu0 0.0
        %1012 = vmatpush1.msra.mxu0 0.0
        %1013 = vmatprep.subr.mxu0 0.0
        %1014 = vmatpush1.msra.mxu0 0.0
        %1015 = vmatprep.subr.mxu0 0.0
        %1016 = vmatpush1.msra.mxu0 0.0
        %1017 = vmatprep.subr.mxu0 0.0
        %1018 = vmatpush1.msra.mxu0 0.0
        %1019 = vmatprep.subr.mxu0 0.0
        %1020 = vmatpush1.msra.mxu0 0.0
        %1021 = vmatprep.subr.mxu0 0.0
        %1022 = vmatpush1.msra.mxu0 0.0
        %1023 = vmatprep.subr.mxu0 0.0
        %1024 = vmatpush1.msra.mxu0 0.0
        %1025 = vmatprep.subr.mxu0 0.0
        %1026 = vmatpush1.msra.mxu0 0.0
        %1027 = vmatprep.subr.mxu0 0.0
        %1028 = vmatpush1.msra.mxu0 0.0
        %1029 = vmatprep.mubr.f32.mxu0 0.0
        %1030 = vmatmul.mubr.f32.gmra.mrb[0].mxu0 %v892
        %v1031 = vpop.f32.mrb[0].mxu0
        %v1032 = vadd.f32 0.0, %v1031
        %v1033 = vpop.f32.mrb[0].mxu0
        %1034 = vdwg.mxu0
        %v1038 = vcombine.low %v961, %v963
        %v1040 = vunpack.c.l.s4 1966171168
        %v1041 = vunpack.c.0.s8 %v1040
        %v1042 = vlaneseq
        %v1043 = vshrl.u32 %v1042, 7
        %v1044 = vsub.s32 %v1041, %v1043
        %v1045 = vrot.slane %v1038, %v1044
        %v1047 = vunpack.c.l.s4 1966171168
        %v1048 = vunpack.c.0.s8 %v1047
        %v1049 = vlaneseq
        %v1050 = vshrl.u32 %v1049, 7
        %v1051 = vsub.s32 %v1048, %v1050
        %v1052 = vrot.slane %v1032, %v1051
        %v1053 = vcombine.low %v1045, %v1052
        %v1055 = vunpack.c.l.s4 1966171168
        %v1056 = vunpack.c.0.s8 %v1055
        %v1057 = vlaneseq
        %v1058 = vshrl.u32 %v1057, 7
        %v1059 = vsub.s32 %v1056, %v1058
        %v1060 = vrot.slane %v1053, %v1059
        %v1062 = vadd.f32 %v196, %v1060
        %v1063 = vxor.u32 %v1062, 2147483648
        %v1064 = vmul.f32 %v1063, 1.442695
        %v1065 = vpow.pop %v1064
        %v1066 = vadd.f32 %v1065, 1.0
        %v1067 = vrcp.pop %v1066
        %v1068 = vmul.f32 1.0, %v1067
        %v1070 = vrot.slane %v1062, 1
        %v1072 = vxor.u32 %v1070, 2147483648
        %v1073 = vmul.f32 %v1072, 1.442695
        %v1074 = vpow.pop %v1073
        %v1075 = vadd.f32 %v1074, 1.0
        %v1076 = vrcp.pop %v1075
        %v1077 = vmul.f32 1.0, %v1076
        %v1078 = vrot.slane %v1062, 2
        %v1080 = vtanh.pop %v1078
        %v1081 = vmul.f32 %v1077, %v307
        %v1082 = vmul.f32 %v1068, %v1080
        %v1083 = vadd.f32 %v1081, %v1082
        %v1085 = vsel %vm198, %v1083, 0
        %1087 = vmatprep.subr.mxu0 %v176
        %1088 = vmatpush1.msra.mxu0 %v175
        %1089 = vmatprep.subr.mxu0 %v179
        %1090 = vmatpush1.msra.mxu0 %v178
        %1091 = vmatprep.subr.mxu0 %v182
        %1092 = vmatpush1.msra.mxu0 %v181
        %1093 = vmatprep.subr.mxu0 %v185
        %1094 = vmatpush1.msra.mxu0 %v184
        %1095 = vmatprep.subr.mxu0 0.0
        %1096 = vmatpush1.msra.mxu0 0.0
        %1097 = vmatprep.subr.mxu0 0.0
        %1098 = vmatpush1.msra.mxu0 0.0
        %1099 = vmatprep.subr.mxu0 0.0
        %1100 = vmatpush1.msra.mxu0 0.0
        %1101 = vmatprep.subr.mxu0 0.0
        %1102 = vmatpush1.msra.mxu0 0.0
        %1103 = vmatprep.subr.mxu0 0.0
        %1104 = vmatpush1.msra.mxu0 0.0
        %1105 = vmatprep.subr.mxu0 0.0
        %1106 = vmatpush1.msra.mxu0 0.0
        %1107 = vmatprep.subr.mxu0 0.0
        %1108 = vmatpush1.msra.mxu0 0.0
        %1109 = vmatprep.subr.mxu0 0.0
        %1110 = vmatpush1.msra.mxu0 0.0
        %1111 = vmatprep.subr.mxu0 0.0
        %1112 = vmatpush1.msra.mxu0 0.0
        %1113 = vmatprep.subr.mxu0 0.0
        %1114 = vmatpush1.msra.mxu0 0.0
        %1115 = vmatprep.subr.mxu0 0.0
        %1116 = vmatpush1.msra.mxu0 0.0
        %1117 = vmatprep.subr.mxu0 0.0
        %1118 = vmatpush1.msra.mxu0 0.0
        %1119 = vmatprep.subr.mxu0 0.0
        %1120 = vmatpush1.msra.mxu0 0.0
        %1121 = vmatprep.subr.mxu0 0.0
        %1122 = vmatpush1.msra.mxu0 0.0
        %1123 = vmatprep.subr.mxu0 0.0
        %1124 = vmatpush1.msra.mxu0 0.0
        %1125 = vmatprep.subr.mxu0 0.0
        %1126 = vmatpush1.msra.mxu0 0.0
        %1127 = vmatprep.subr.mxu0 0.0
        %1128 = vmatpush1.msra.mxu0 0.0
        %1129 = vmatprep.subr.mxu0 0.0
        %1130 = vmatpush1.msra.mxu0 0.0
        %1131 = vmatprep.subr.mxu0 0.0
        %1132 = vmatpush1.msra.mxu0 0.0
        %1133 = vmatprep.subr.mxu0 0.0
        %1134 = vmatpush1.msra.mxu0 0.0
        %1135 = vmatprep.subr.mxu0 0.0
        %1136 = vmatpush1.msra.mxu0 0.0
        %1137 = vmatprep.subr.mxu0 0.0
        %1138 = vmatpush1.msra.mxu0 0.0
        %1139 = vmatprep.subr.mxu0 0.0
        %1140 = vmatpush1.msra.mxu0 0.0
        %1141 = vmatprep.subr.mxu0 0.0
        %1142 = vmatpush1.msra.mxu0 0.0
        %1143 = vmatprep.subr.mxu0 0.0
        %1144 = vmatpush1.msra.mxu0 0.0
        %1145 = vmatprep.subr.mxu0 0.0
        %1146 = vmatpush1.msra.mxu0 0.0
        %1147 = vmatprep.subr.mxu0 0.0
        %1148 = vmatpush1.msra.mxu0 0.0
        %1149 = vmatprep.subr.mxu0 0.0
        %1150 = vmatpush1.msra.mxu0 0.0
        %1151 = vmatprep.mubr.f32.mxu0 0.0
        %1152 = vmatmul.mubr.f32.gmra.mrb[0].mxu0 %v1085
        %v1153 = vpop.f32.mrb[0].mxu0
        %v1154 = vadd.f32 0.0, %v1153
        %v1155 = vpop.f32.mrb[0].mxu0
        %v1156 = vadd.f32 0.0, %v1155
        %1157 = vdwg.mxu0
        %1158 = vmatprep.subr.mxu0 0.0
        %1159 = vmatpush1.msra.mxu0 %v177
        %1160 = vmatprep.subr.mxu0 0.0
        %1161 = vmatpush1.msra.mxu0 %v180
        %1162 = vmatprep.subr.mxu0 0.0
        %1163 = vmatpush1.msra.mxu0 %v183
        %1164 = vmatprep.subr.mxu0 0.0
        %1165 = vmatpush1.msra.mxu0 %v186
        %1166 = vmatprep.subr.mxu0 0.0
        %1167 = vmatpush1.msra.mxu0 0.0
        %1168 = vmatprep.subr.mxu0 0.0
        %1169 = vmatpush1.msra.mxu0 0.0
        %1170 = vmatprep.subr.mxu0 0.0
        %1171 = vmatpush1.msra.mxu0 0.0
        %1172 = vmatprep.subr.mxu0 0.0
        %1173 = vmatpush1.msra.mxu0 0.0
        %1174 = vmatprep.subr.mxu0 0.0
        %1175 = vmatpush1.msra.mxu0 0.0
        %1176 = vmatprep.subr.mxu0 0.0
        %1177 = vmatpush1.msra.mxu0 0.0
        %1178 = vmatprep.subr.mxu0 0.0
        %1179 = vmatpush1.msra.mxu0 0.0
        %1180 = vmatprep.subr.mxu0 0.0
        %1181 = vmatpush1.msra.mxu0 0.0
        %1182 = vmatprep.subr.mxu0 0.0
        %1183 = vmatpush1.msra.mxu0 0.0
        %1184 = vmatprep.subr.mxu0 0.0
        %1185 = vmatpush1.msra.mxu0 0.0
        %1186 = vmatprep.subr.mxu0 0.0
        %1187 = vmatpush1.msra.mxu0 0.0
        %1188 = vmatprep.subr.mxu0 0.0
        %1189 = vmatpush1.msra.mxu0 0.0
        %1190 = vmatprep.subr.mxu0 0.0
        %1191 = vmatpush1.msra.mxu0 0.0
        %1192 = vmatprep.subr.mxu0 0.0
        %1193 = vmatpush1.msra.mxu0 0.0
        %1194 = vmatprep.subr.mxu0 0.0
        %1195 = vmatpush1.msra.mxu0 0.0
        %1196 = vmatprep.subr.mxu0 0.0
        %1197 = vmatpush1.msra.mxu0 0.0
        %1198 = vmatprep.subr.mxu0 0.0
        %1199 = vmatpush1.msra.mxu0 0.0
        %1200 = vmatprep.subr.mxu0 0.0
        %1201 = vmatpush1.msra.mxu0 0.0
        %1202 = vmatprep.subr.mxu0 0.0
        %1203 = vmatpush1.msra.mxu0 0.0
        %1204 = vmatprep.subr.mxu0 0.0
        %1205 = vmatpush1.msra.mxu0 0.0
        %1206 = vmatprep.subr.mxu0 0.0
        %1207 = vmatpush1.msra.mxu0 0.0
        %1208 = vmatprep.subr.mxu0 0.0
        %1209 = vmatpush1.msra.mxu0 0.0
        %1210 = vmatprep.subr.mxu0 0.0
        %1211 = vmatpush1.msra.mxu0 0.0
        %1212 = vmatprep.subr.mxu0 0.0
        %1213 = vmatpush1.msra.mxu0 0.0
        %1214 = vmatprep.subr.mxu0 0.0
        %1215 = vmatpush1.msra.mxu0 0.0
        %1216 = vmatprep.subr.mxu0 0.0
        %1217 = vmatpush1.msra.mxu0 0.0
        %1218 = vmatprep.subr.mxu0 0.0
        %1219 = vmatpush1.msra.mxu0 0.0
        %1220 = vmatprep.subr.mxu0 0.0
        %1221 = vmatpush1.msra.mxu0 0.0
        %1222 = vmatprep.mubr.f32.mxu0 0.0
        %1223 = vmatmul.mubr.f32.gmra.mrb[0].mxu0 %v1085
        %v1224 = vpop.f32.mrb[0].mxu0
        %v1225 = vadd.f32 0.0, %v1224
        %v1226 = vpop.f32.mrb[0].mxu0
        %1227 = vdwg.mxu0
        %v1231 = vcombine.low %v1154, %v1156
        %v1233 = vunpack.c.l.s4 1966171168
        %v1234 = vunpack.c.0.s8 %v1233
        %v1235 = vlaneseq
        %v1236 = vshrl.u32 %v1235, 7
        %v1237 = vsub.s32 %v1234, %v1236
        %v1238 = vrot.slane %v1231, %v1237
        %v1240 = vunpack.c.l.s4 1966171168
        %v1241 = vunpack.c.0.s8 %v1240
        %v1242 = vlaneseq
        %v1243 = vshrl.u32 %v1242, 7
        %v1244 = vsub.s32 %v1241, %v1243
        %v1245 = vrot.slane %v1225, %v1244
        %v1246 = vcombine.low %v1238, %v1245
        %v1248 = vunpack.c.l.s4 1966171168
        %v1249 = vunpack.c.0.s8 %v1248
        %v1250 = vlaneseq
        %v1251 = vshrl.u32 %v1250, 7
        %v1252 = vsub.s32 %v1249, %v1251
        %v1253 = vrot.slane %v1246, %v1252
        %v1255 = vadd.f32 %v196, %v1253
        %v1256 = vxor.u32 %v1255, 2147483648
        %v1257 = vmul.f32 %v1256, 1.442695
        %v1258 = vpow.pop %v1257
        %v1259 = vadd.f32 %v1258, 1.0
        %v1260 = vrcp.pop %v1259
        %v1261 = vmul.f32 1.0, %v1260
        %v1263 = vrot.slane %v1255, 1
        %v1265 = vxor.u32 %v1263, 2147483648
        %v1266 = vmul.f32 %v1265, 1.442695
        %v1267 = vpow.pop %v1266
        %v1268 = vadd.f32 %v1267, 1.0
        %v1269 = vrcp.pop %v1268
        %v1270 = vmul.f32 1.0, %v1269
        %v1271 = vrot.slane %v1255, 2
        %v1273 = vtanh.pop %v1271
        %v1274 = vmul.f32 %v1270, %v307
        %v1275 = vmul.f32 %v1261, %v1273
        %v1276 = vadd.f32 %v1274, %v1275
        %v1278 = vsel %vm198, %v1276, 0
        %1280 = vmatprep.subr.mxu0 %v176
        %1281 = vmatpush1.msra.mxu0 %v175
        %1282 = vmatprep.subr.mxu0 %v179
        %1283 = vmatpush1.msra.mxu0 %v178
        %1284 = vmatprep.subr.mxu0 %v182
        %1285 = vmatpush1.msra.mxu0 %v181
        %1286 = vmatprep.subr.mxu0 %v185
        %1287 = vmatpush1.msra.mxu0 %v184
        %1288 = vmatprep.subr.mxu0 0.0
        %1289 = vmatpush1.msra.mxu0 0.0
        %1290 = vmatprep.subr.mxu0 0.0
        %1291 = vmatpush1.msra.mxu0 0.0
        %1292 = vmatprep.subr.mxu0 0.0
        %1293 = vmatpush1.msra.mxu0 0.0
        %1294 = vmatprep.subr.mxu0 0.0
        %1295 = vmatpush1.msra.mxu0 0.0
        %1296 = vmatprep.subr.mxu0 0.0
        %1297 = vmatpush1.msra.mxu0 0.0
        %1298 = vmatprep.subr.mxu0 0.0
        %1299 = vmatpush1.msra.mxu0 0.0
        %1300 = vmatprep.subr.mxu0 0.0
        %1301 = vmatpush1.msra.mxu0 0.0
        %1302 = vmatprep.subr.mxu0 0.0
        %1303 = vmatpush1.msra.mxu0 0.0
        %1304 = vmatprep.subr.mxu0 0.0
        %1305 = vmatpush1.msra.mxu0 0.0
        %1306 = vmatprep.subr.mxu0 0.0
        %1307 = vmatpush1.msra.mxu0 0.0
        %1308 = vmatprep.subr.mxu0 0.0
        %1309 = vmatpush1.msra.mxu0 0.0
        %1310 = vmatprep.subr.mxu0 0.0
        %1311 = vmatpush1.msra.mxu0 0.0
        %1312 = vmatprep.subr.mxu0 0.0
        %1313 = vmatpush1.msra.mxu0 0.0
        %1314 = vmatprep.subr.mxu0 0.0
        %1315 = vmatpush1.msra.mxu0 0.0
        %1316 = vmatprep.subr.mxu0 0.0
        %1317 = vmatpush1.msra.mxu0 0.0
        %1318 = vmatprep.subr.mxu0 0.0
        %1319 = vmatpush1.msra.mxu0 0.0
        %1320 = vmatprep.subr.mxu0 0.0
        %1321 = vmatpush1.msra.mxu0 0.0
        %1322 = vmatprep.subr.mxu0 0.0
        %1323 = vmatpush1.msra.mxu0 0.0
        %1324 = vmatprep.subr.mxu0 0.0
        %1325 = vmatpush1.msra.mxu0 0.0
        %1326 = vmatprep.subr.mxu0 0.0
        %1327 = vmatpush1.msra.mxu0 0.0
        %1328 = vmatprep.subr.mxu0 0.0
        %1329 = vmatpush1.msra.mxu0 0.0
        %1330 = vmatprep.subr.mxu0 0.0
        %1331 = vmatpush1.msra.mxu0 0.0
        %1332 = vmatprep.subr.mxu0 0.0
        %1333 = vmatpush1.msra.mxu0 0.0
        %1334 = vmatprep.subr.mxu0 0.0
        %1335 = vmatpush1.msra.mxu0 0.0
        %1336 = vmatprep.subr.mxu0 0.0
        %1337 = vmatpush1.msra.mxu0 0.0
        %1338 = vmatprep.subr.mxu0 0.0
        %1339 = vmatpush1.msra.mxu0 0.0
        %1340 = vmatprep.subr.mxu0 0.0
        %1341 = vmatpush1.msra.mxu0 0.0
        %1342 = vmatprep.subr.mxu0 0.0
        %1343 = vmatpush1.msra.mxu0 0.0
        %1344 = vmatprep.mubr.f32.mxu0 0.0
        %1345 = vmatmul.mubr.f32.gmra.mrb[0].mxu0 %v1278
        %v1346 = vpop.f32.mrb[0].mxu0
        %v1347 = vadd.f32 0.0, %v1346
        %v1348 = vpop.f32.mrb[0].mxu0
        %v1349 = vadd.f32 0.0, %v1348
        %1350 = vdwg.mxu0
        %1351 = vmatprep.subr.mxu0 0.0
        %1352 = vmatpush1.msra.mxu0 %v177
        %1353 = vmatprep.subr.mxu0 0.0
        %1354 = vmatpush1.msra.mxu0 %v180
        %1355 = vmatprep.subr.mxu0 0.0
        %1356 = vmatpush1.msra.mxu0 %v183
        %1357 = vmatprep.subr.mxu0 0.0
        %1358 = vmatpush1.msra.mxu0 %v186
        %1359 = vmatprep.subr.mxu0 0.0
        %1360 = vmatpush1.msra.mxu0 0.0
        %1361 = vmatprep.subr.mxu0 0.0
        %1362 = vmatpush1.msra.mxu0 0.0
        %1363 = vmatprep.subr.mxu0 0.0
        %1364 = vmatpush1.msra.mxu0 0.0
        %1365 = vmatprep.subr.mxu0 0.0
        %1366 = vmatpush1.msra.mxu0 0.0
        %1367 = vmatprep.subr.mxu0 0.0
        %1368 = vmatpush1.msra.mxu0 0.0
        %1369 = vmatprep.subr.mxu0 0.0
        %1370 = vmatpush1.msra.mxu0 0.0
        %1371 = vmatprep.subr.mxu0 0.0
        %1372 = vmatpush1.msra.mxu0 0.0
        %1373 = vmatprep.subr.mxu0 0.0
        %1374 = vmatpush1.msra.mxu0 0.0
        %1375 = vmatprep.subr.mxu0 0.0
        %1376 = vmatpush1.msra.mxu0 0.0
        %1377 = vmatprep.subr.mxu0 0.0
        %1378 = vmatpush1.msra.mxu0 0.0
        %1379 = vmatprep.subr.mxu0 0.0
        %1380 = vmatpush1.msra.mxu0 0.0
        %1381 = vmatprep.subr.mxu0 0.0
        %1382 = vmatpush1.msra.mxu0 0.0
        %1383 = vmatprep.subr.mxu0 0.0
        %1384 = vmatpush1.msra.mxu0 0.0
        %1385 = vmatprep.subr.mxu0 0.0
        %1386 = vmatpush1.msra.mxu0 0.0
        %1387 = vmatprep.subr.mxu0 0.0
        %1388 = vmatpush1.msra.mxu0 0.0
        %1389 = vmatprep.subr.mxu0 0.0
        %1390 = vmatpush1.msra.mxu0 0.0
        %1391 = vmatprep.subr.mxu0 0.0
        %1392 = vmatpush1.msra.mxu0 0.0
        %1393 = vmatprep.subr.mxu0 0.0
        %1394 = vmatpush1.msra.mxu0 0.0
        %1395 = vmatprep.subr.mxu0 0.0
        %1396 = vmatpush1.msra.mxu0 0.0
        %1397 = vmatprep.subr.mxu0 0.0
        %1398 = vmatpush1.msra.mxu0 0.0
        %1399 = vmatprep.subr.mxu0 0.0
        %1400 = vmatpush1.msra.mxu0 0.0
        %1401 = vmatprep.subr.mxu0 0.0
        %1402 = vmatpush1.msra.mxu0 0.0
        %1403 = vmatprep.subr.mxu0 0.0
        %1404 = vmatpush1.msra.mxu0 0.0
        %1405 = vmatprep.subr.mxu0 0.0
        %1406 = vmatpush1.msra.mxu0 0.0
        %1407 = vmatprep.subr.mxu0 0.0
        %1408 = vmatpush1.msra.mxu0 0.0
        %1409 = vmatprep.subr.mxu0 0.0
        %1410 = vmatpush1.msra.mxu0 0.0
        %1411 = vmatprep.subr.mxu0 0.0
        %1412 = vmatpush1.msra.mxu0 0.0
        %1413 = vmatprep.subr.mxu0 0.0
        %1414 = vmatpush1.msra.mxu0 0.0
        %1415 = vmatprep.mubr.f32.mxu0 0.0
        %1416 = vmatmul.mubr.f32.gmra.mrb[0].mxu0 %v1278
        %v1417 = vpop.f32.mrb[0].mxu0
        %v1418 = vadd.f32 0.0, %v1417
        %v1419 = vpop.f32.mrb[0].mxu0
        %1420 = vdwg.mxu0
        %v1424 = vcombine.low %v1347, %v1349
        %v1426 = vunpack.c.l.s4 1966171168
        %v1427 = vunpack.c.0.s8 %v1426
        %v1428 = vlaneseq
        %v1429 = vshrl.u32 %v1428, 7
        %v1430 = vsub.s32 %v1427, %v1429
        %v1431 = vrot.slane %v1424, %v1430
        %v1433 = vunpack.c.l.s4 1966171168
        %v1434 = vunpack.c.0.s8 %v1433
        %v1435 = vlaneseq
        %v1436 = vshrl.u32 %v1435, 7
        %v1437 = vsub.s32 %v1434, %v1436
        %v1438 = vrot.slane %v1418, %v1437
        %v1439 = vcombine.low %v1431, %v1438
        %v1441 = vunpack.c.l.s4 1966171168
        %v1442 = vunpack.c.0.s8 %v1441
        %v1443 = vlaneseq
        %v1444 = vshrl.u32 %v1443, 7
        %v1445 = vsub.s32 %v1442, %v1444
        %v1446 = vrot.slane %v1439, %v1445
        %v1448 = vadd.f32 %v196, %v1446
        %v1449 = vxor.u32 %v1448, 2147483648
        %v1450 = vmul.f32 %v1449, 1.442695
        %v1451 = vpow.pop %v1450
        %v1452 = vadd.f32 %v1451, 1.0
        %v1453 = vrcp.pop %v1452
        %v1454 = vmul.f32 1.0, %v1453
        %v1456 = vrot.slane %v1448, 1
        %v1458 = vxor.u32 %v1456, 2147483648
        %v1459 = vmul.f32 %v1458, 1.442695
        %v1460 = vpow.pop %v1459
        %v1461 = vadd.f32 %v1460, 1.0
        %v1462 = vrcp.pop %v1461
        %v1463 = vmul.f32 1.0, %v1462
        %v1464 = vrot.slane %v1448, 2
        %v1466 = vtanh.pop %v1464
        %v1467 = vmul.f32 %v1463, %v307
        %v1468 = vmul.f32 %v1454, %v1466
        %v1469 = vadd.f32 %v1467, %v1468
        %v1471 = vsel %vm198, %v1469, 0
        %1473 = vmatprep.subr.mxu0 %v176
        %1474 = vmatpush1.msra.mxu0 %v175
        %1475 = vmatprep.subr.mxu0 %v179
        %1476 = vmatpush1.msra.mxu0 %v178
        %1477 = vmatprep.subr.mxu0 %v182
        %1478 = vmatpush1.msra.mxu0 %v181
        %1479 = vmatprep.subr.mxu0 %v185
        %1480 = vmatpush1.msra.mxu0 %v184
        %1481 = vmatprep.subr.mxu0 0.0
        %1482 = vmatpush1.msra.mxu0 0.0
        %1483 = vmatprep.subr.mxu0 0.0
        %1484 = vmatpush1.msra.mxu0 0.0
        %1485 = vmatprep.subr.mxu0 0.0
        %1486 = vmatpush1.msra.mxu0 0.0
        %1487 = vmatprep.subr.mxu0 0.0
        %1488 = vmatpush1.msra.mxu0 0.0
        %1489 = vmatprep.subr.mxu0 0.0
        %1490 = vmatpush1.msra.mxu0 0.0
        %1491 = vmatprep.subr.mxu0 0.0
        %1492 = vmatpush1.msra.mxu0 0.0
        %1493 = vmatprep.subr.mxu0 0.0
        %1494 = vmatpush1.msra.mxu0 0.0
        %1495 = vmatprep.subr.mxu0 0.0
        %1496 = vmatpush1.msra.mxu0 0.0
        %1497 = vmatprep.subr.mxu0 0.0
        %1498 = vmatpush1.msra.mxu0 0.0
        %1499 = vmatprep.subr.mxu0 0.0
        %1500 = vmatpush1.msra.mxu0 0.0
        %1501 = vmatprep.subr.mxu0 0.0
        %1502 = vmatpush1.msra.mxu0 0.0
        %1503 = vmatprep.subr.mxu0 0.0
        %1504 = vmatpush1.msra.mxu0 0.0
        %1505 = vmatprep.subr.mxu0 0.0
        %1506 = vmatpush1.msra.mxu0 0.0
        %1507 = vmatprep.subr.mxu0 0.0
        %1508 = vmatpush1.msra.mxu0 0.0
        %1509 = vmatprep.subr.mxu0 0.0
        %1510 = vmatpush1.msra.mxu0 0.0
        %1511 = vmatprep.subr.mxu0 0.0
        %1512 = vmatpush1.msra.mxu0 0.0
        %1513 = vmatprep.subr.mxu0 0.0
        %1514 = vmatpush1.msra.mxu0 0.0
        %1515 = vmatprep.subr.mxu0 0.0
        %1516 = vmatpush1.msra.mxu0 0.0
        %1517 = vmatprep.subr.mxu0 0.0
        %1518 = vmatpush1.msra.mxu0 0.0
        %1519 = vmatprep.subr.mxu0 0.0
        %1520 = vmatpush1.msra.mxu0 0.0
        %1521 = vmatprep.subr.mxu0 0.0
        %1522 = vmatpush1.msra.mxu0 0.0
        %1523 = vmatprep.subr.mxu0 0.0
        %1524 = vmatpush1.msra.mxu0 0.0
        %1525 = vmatprep.subr.mxu0 0.0
        %1526 = vmatpush1.msra.mxu0 0.0
        %1527 = vmatprep.subr.mxu0 0.0
        %1528 = vmatpush1.msra.mxu0 0.0
        %1529 = vmatprep.subr.mxu0 0.0
        %1530 = vmatpush1.msra.mxu0 0.0
        %1531 = vmatprep.subr.mxu0 0.0
        %1532 = vmatpush1.msra.mxu0 0.0
        %1533 = vmatprep.subr.mxu0 0.0
        %1534 = vmatpush1.msra.mxu0 0.0
        %1535 = vmatprep.subr.mxu0 0.0
        %1536 = vmatpush1.msra.mxu0 0.0
        %1537 = vmatprep.mubr.f32.mxu0 0.0
        %1538 = vmatmul.mubr.f32.gmra.mrb[0].mxu0 %v1471
        %v1539 = vpop.f32.mrb[0].mxu0
        %v1540 = vadd.f32 0.0, %v1539
        %v1541 = vpop.f32.mrb[0].mxu0
        %v1542 = vadd.f32 0.0, %v1541
        %1543 = vdwg.mxu0
        %1544 = vmatprep.subr.mxu0 0.0
        %1545 = vmatpush1.msra.mxu0 %v177
        %1546 = vmatprep.subr.mxu0 0.0
        %1547 = vmatpush1.msra.mxu0 %v180
        %1548 = vmatprep.subr.mxu0 0.0
        %1549 = vmatpush1.msra.mxu0 %v183
        %1550 = vmatprep.subr.mxu0 0.0
        %1551 = vmatpush1.msra.mxu0 %v186
        %1552 = vmatprep.subr.mxu0 0.0
        %1553 = vmatpush1.msra.mxu0 0.0
        %1554 = vmatprep.subr.mxu0 0.0
        %1555 = vmatpush1.msra.mxu0 0.0
        %1556 = vmatprep.subr.mxu0 0.0
        %1557 = vmatpush1.msra.mxu0 0.0
        %1558 = vmatprep.subr.mxu0 0.0
        %1559 = vmatpush1.msra.mxu0 0.0
        %1560 = vmatprep.subr.mxu0 0.0
        %1561 = vmatpush1.msra.mxu0 0.0
        %1562 = vmatprep.subr.mxu0 0.0
        %1563 = vmatpush1.msra.mxu0 0.0
        %1564 = vmatprep.subr.mxu0 0.0
        %1565 = vmatpush1.msra.mxu0 0.0
        %1566 = vmatprep.subr.mxu0 0.0
        %1567 = vmatpush1.msra.mxu0 0.0
        %1568 = vmatprep.subr.mxu0 0.0
        %1569 = vmatpush1.msra.mxu0 0.0
        %1570 = vmatprep.subr.mxu0 0.0
        %1571 = vmatpush1.msra.mxu0 0.0
        %1572 = vmatprep.subr.mxu0 0.0
        %1573 = vmatpush1.msra.mxu0 0.0
        %1574 = vmatprep.subr.mxu0 0.0
        %1575 = vmatpush1.msra.mxu0 0.0
        %1576 = vmatprep.subr.mxu0 0.0
        %1577 = vmatpush1.msra.mxu0 0.0
        %1578 = vmatprep.subr.mxu0 0.0
        %1579 = vmatpush1.msra.mxu0 0.0
        %1580 = vmatprep.subr.mxu0 0.0
        %1581 = vmatpush1.msra.mxu0 0.0
        %1582 = vmatprep.subr.mxu0 0.0
        %1583 = vmatpush1.msra.mxu0 0.0
        %1584 = vmatprep.subr.mxu0 0.0
        %1585 = vmatpush1.msra.mxu0 0.0
        %1586 = vmatprep.subr.mxu0 0.0
        %1587 = vmatpush1.msra.mxu0 0.0
        %1588 = vmatprep.subr.mxu0 0.0
        %1589 = vmatpush1.msra.mxu0 0.0
        %1590 = vmatprep.subr.mxu0 0.0
        %1591 = vmatpush1.msra.mxu0 0.0
        %1592 = vmatprep.subr.mxu0 0.0
        %1593 = vmatpush1.msra.mxu0 0.0
        %1594 = vmatprep.subr.mxu0 0.0
        %1595 = vmatpush1.msra.mxu0 0.0
        %1596 = vmatprep.subr.mxu0 0.0
        %1597 = vmatpush1.msra.mxu0 0.0
        %1598 = vmatprep.subr.mxu0 0.0
        %1599 = vmatpush1.msra.mxu0 0.0
        %1600 = vmatprep.subr.mxu0 0.0
        %1601 = vmatpush1.msra.mxu0 0.0
        %1602 = vmatprep.subr.mxu0 0.0
        %1603 = vmatpush1.msra.mxu0 0.0
        %1604 = vmatprep.subr.mxu0 0.0
        %1605 = vmatpush1.msra.mxu0 0.0
        %1606 = vmatprep.subr.mxu0 0.0
        %1607 = vmatpush1.msra.mxu0 0.0
        %1608 = vmatprep.mubr.f32.mxu0 0.0
        %1609 = vmatmul.mubr.f32.gmra.mrb[0].mxu0 %v1471
        %v1610 = vpop.f32.mrb[0].mxu0
        %v1611 = vadd.f32 0.0, %v1610
        %v1612 = vpop.f32.mrb[0].mxu0
        %1613 = vdwg.mxu0
        %v1617 = vcombine.low %v1540, %v1542
        %v1619 = vunpack.c.l.s4 1966171168
        %v1620 = vunpack.c.0.s8 %v1619
        %v1621 = vlaneseq
        %v1622 = vshrl.u32 %v1621, 7
        %v1623 = vsub.s32 %v1620, %v1622
        %v1624 = vrot.slane %v1617, %v1623
        %v1626 = vunpack.c.l.s4 1966171168
        %v1627 = vunpack.c.0.s8 %v1626
        %v1628 = vlaneseq
        %v1629 = vshrl.u32 %v1628, 7
        %v1630 = vsub.s32 %v1627, %v1629
        %v1631 = vrot.slane %v1611, %v1630
        %v1632 = vcombine.low %v1624, %v1631
        %v1634 = vunpack.c.l.s4 1966171168
        %v1635 = vunpack.c.0.s8 %v1634
        %v1636 = vlaneseq
        %v1637 = vshrl.u32 %v1636, 7
        %v1638 = vsub.s32 %v1635, %v1637
        %v1639 = vrot.slane %v1632, %v1638
        %v1641 = vadd.f32 %v196, %v1639
        %v1642 = vxor.u32 %v1641, 2147483648
        %v1643 = vmul.f32 %v1642, 1.442695
        %v1644 = vpow.pop %v1643
        %v1645 = vadd.f32 %v1644, 1.0
        %v1646 = vrcp.pop %v1645
        %v1647 = vmul.f32 1.0, %v1646
        %v1649 = vrot.slane %v1641, 1
        %v1651 = vxor.u32 %v1649, 2147483648
        %v1652 = vmul.f32 %v1651, 1.442695
        %v1653 = vpow.pop %v1652
        %v1654 = vadd.f32 %v1653, 1.0
        %v1655 = vrcp.pop %v1654
        %v1656 = vmul.f32 1.0, %v1655
        %v1657 = vrot.slane %v1641, 2
        %v1659 = vtanh.pop %v1657
        %v1660 = vmul.f32 %v1656, %v307
        %v1661 = vmul.f32 %v1647, %v1659
        %v1662 = vadd.f32 %v1660, %v1661
        %v1663 = vlaneseq
        %v1664 = vshrl.u32 %v1663, 7
        %v1665 = vsub.s32 0, %v1664
        %v1666 = vrot.slane %v504, %v1665
        %v1668 = vlaneseq
        %v1669 = vshrl.u32 %v1668, 7
        %v1670 = vsub.s32 0, %v1669
        %v1671 = vrot.slane %v697, %v1670
        %v1673 = vlaneseq
        %v1674 = vshrl.u32 %v1673, 7
        %v1675 = vsub.s32 0, %v1674
        %v1676 = vrot.slane %v890, %v1675
        %v1678 = vlaneseq
        %v1679 = vshrl.u32 %v1678, 7
        %v1680 = vsub.s32 0, %v1679
        %v1681 = vrot.slane %v1083, %v1680
        %v1683 = vlaneseq
        %v1684 = vshrl.u32 %v1683, 7
        %v1685 = vsub.s32 0, %v1684
        %v1686 = vrot.slane %v1276, %v1685
        %v1688 = vlaneseq
        %v1689 = vshrl.u32 %v1688, 7
        %v1690 = vsub.s32 0, %v1689
        %v1691 = vrot.slane %v1469, %v1690
        %v1694 = vlaneseq
        %v1695 = vshrl.u32 %v1694, 7
        %v1696 = vsub.s32 0, %v1695
        %v1697 = vrot.slane %v1662, %v1696
        %vm1699 = vcmask 1040384
        %v1700 = vsel %vm1699, %v311, %v1666
        %vm1701 = vcmask 1041408
        %v1702 = vsel %vm1701, %v1700, %v1671
        %vm1703 = vcmask 1042432
        %v1704 = vsel %vm1703, %v1702, %v1676
        %vm1705 = vcmask 1043456
        %v1706 = vsel %vm1705, %v1704, %v1681
        %vm1707 = vcmask 1044480
        %v1708 = vsel %vm1707, %v1706, %v1686
        %vm1709 = vcmask 1045504
        %v1710 = vsel %vm1709, %v1708, %v1691
        %vm1711 = vcmask 1046528
        %v1712 = vsel %vm1711, %v1710, %v1697
        %v1714 = vsel %vm198, %v1712, 0
        %1716 = vmatprep.subr.mxu0 0.0
        %1717 = vmatpush1.msra.mxu0 %v187
        %1718 = vmatprep.subr.mxu0 0.0
        %1719 = vmatpush1.msra.mxu0 %v188
        %1720 = vmatprep.subr.mxu0 0.0
        %1721 = vmatpush1.msra.mxu0 %v189
        %1722 = vmatprep.subr.mxu0 0.0
        %1723 = vmatpush1.msra.mxu0 %v190
        %1724 = vmatprep.subr.mxu0 0.0
        %1725 = vmatpush1.msra.mxu0 0.0
        %1726 = vmatprep.subr.mxu0 0.0
        %1727 = vmatpush1.msra.mxu0 0.0
        %1728 = vmatprep.subr.mxu0 0.0
        %1729 = vmatpush1.msra.mxu0 0.0
        %1730 = vmatprep.subr.mxu0 0.0
        %1731 = vmatpush1.msra.mxu0 0.0
        %1732 = vmatprep.subr.mxu0 0.0
        %1733 = vmatpush1.msra.mxu0 0.0
        %1734 = vmatprep.subr.mxu0 0.0
        %1735 = vmatpush1.msra.mxu0 0.0
        %1736 = vmatprep.subr.mxu0 0.0
        %1737 = vmatpush1.msra.mxu0 0.0
        %1738 = vmatprep.subr.mxu0 0.0
        %1739 = vmatpush1.msra.mxu0 0.0
        %1740 = vmatprep.subr.mxu0 0.0
        %1741 = vmatpush1.msra.mxu0 0.0
        %1742 = vmatprep.subr.mxu0 0.0
        %1743 = vmatpush1.msra.mxu0 0.0
        %1744 = vmatprep.subr.mxu0 0.0
        %1745 = vmatpush1.msra.mxu0 0.0
        %1746 = vmatprep.subr.mxu0 0.0
        %1747 = vmatpush1.msra.mxu0 0.0
        %1748 = vmatprep.subr.mxu0 0.0
        %1749 = vmatpush1.msra.mxu0 0.0
        %1750 = vmatprep.subr.mxu0 0.0
        %1751 = vmatpush1.msra.mxu0 0.0
        %1752 = vmatprep.subr.mxu0 0.0
        %1753 = vmatpush1.msra.mxu0 0.0
        %1754 = vmatprep.subr.mxu0 0.0
        %1755 = vmatpush1.msra.mxu0 0.0
        %1756 = vmatprep.subr.mxu0 0.0
        %1757 = vmatpush1.msra.mxu0 0.0
        %1758 = vmatprep.subr.mxu0 0.0
        %1759 = vmatpush1.msra.mxu0 0.0
        %1760 = vmatprep.subr.mxu0 0.0
        %1761 = vmatpush1.msra.mxu0 0.0
        %1762 = vmatprep.subr.mxu0 0.0
        %1763 = vmatpush1.msra.mxu0 0.0
        %1764 = vmatprep.subr.mxu0 0.0
        %1765 = vmatpush1.msra.mxu0 0.0
        %1766 = vmatprep.subr.mxu0 0.0
        %1767 = vmatpush1.msra.mxu0 0.0
        %1768 = vmatprep.subr.mxu0 0.0
        %1769 = vmatpush1.msra.mxu0 0.0
        %1770 = vmatprep.subr.mxu0 0.0
        %1771 = vmatpush1.msra.mxu0 0.0
        %1772 = vmatprep.subr.mxu0 0.0
        %1773 = vmatpush1.msra.mxu0 0.0
        %1774 = vmatprep.subr.mxu0 0.0
        %1775 = vmatpush1.msra.mxu0 0.0
        %1776 = vmatprep.subr.mxu0 0.0
        %1777 = vmatpush1.msra.mxu0 0.0
        %1778 = vmatprep.subr.mxu0 0.0
        %1779 = vmatpush1.msra.mxu0 0.0
        %1780 = vmatprep.mubr.f32.mxu0 0.0
        %1781 = vmatmul.mubr.f32.gmra.mrb[0].mxu0 %v1714
        %v1782 = vpop.f32.mrb[0].mxu0
        %v1783 = vadd.f32 0.0, %v1782
        %v1784 = vpop.f32.mrb[0].mxu0
        %1785 = vdwg.mxu0
        %v1787 = vcombine.high %v1783, %v1783
        %v1789 = vunpack.c.l.s4 1966171168
        %v1790 = vunpack.c.0.s8 %v1789
        %v1791 = vlaneseq
        %v1792 = vshrl.u32 %v1791, 7
        %v1793 = vsub.s32 %v1790, %v1792
        %v1794 = vrot.slane %v1783, %v1793
        %v1796 = vunpack.c.l.s4 1966171168
        %v1797 = vunpack.c.0.s8 %v1796
        %v1798 = vlaneseq
        %v1799 = vshrl.u32 %v1798, 7
        %v1800 = vsub.s32 %v1797, %v1799
        %v1801 = vrot.slane %v1787, %v1800
        %v1802 = vcombine.high %v1794, %v1794
        %v1803 = vcombine.high %v1801, %v1801
        %v1805 = vunpack.c.l.s4 1966171168
        %v1806 = vunpack.c.0.s8 %v1805
        %v1807 = vlaneseq
        %v1808 = vshrl.u32 %v1807, 7
        %v1809 = vsub.s32 %v1806, %v1808
        %v1810 = vrot.slane %v1794, %v1809
        %v1812 = vunpack.c.l.s4 1966171168
        %v1813 = vunpack.c.0.s8 %v1812
        %v1814 = vlaneseq
        %v1815 = vshrl.u32 %v1814, 7
        %v1816 = vsub.s32 %v1813, %v1815
        %v1817 = vrot.slane %v1801, %v1816
        %v1819 = vunpack.c.l.s4 1966171168
        %v1820 = vunpack.c.0.s8 %v1819
        %v1821 = vlaneseq
        %v1822 = vshrl.u32 %v1821, 7
        %v1823 = vsub.s32 %v1820, %v1822
        %v1824 = vrot.slane %v1802, %v1823
        %v1826 = vunpack.c.l.s4 1966171168
        %v1827 = vunpack.c.0.s8 %v1826
        %v1828 = vlaneseq
        %v1829 = vshrl.u32 %v1828, 7
        %v1830 = vsub.s32 %v1827, %v1829
        %v1831 = vrot.slane %v1803, %v1830
        %v1832 = vcombine.high %v1810, %v1810
        %v1833 = vcombine.high %v1817, %v1817
        %v1834 = vcombine.high %v1824, %v1824
        %v1835 = vcombine.high %v1831, %v1831
        %v1836 = vlaneseq
        %v1837 = vshrl.u32 %v1836, 7
        %v1838 = vsub.s32 0, %v1837
        %v1839 = vrot.slane %v1810, %v1838
        %v1840 = vlaneseq
        %v1841 = vshrl.u32 %v1840, 7
        %v1842 = vsub.s32 0, %v1841
        %v1843 = vrot.slane %v1824, %v1842
        %v1844 = vlaneseq
        %v1845 = vshrl.u32 %v1844, 7
        %v1846 = vsub.s32 0, %v1845
        %v1847 = vrot.slane %v1832, %v1846
        %v1848 = vlaneseq
        %v1849 = vshrl.u32 %v1848, 7
        %v1850 = vsub.s32 0, %v1849
        %v1851 = vrot.slane %v1834, %v1850
        %v1852 = vlaneseq
        %v1853 = vshrl.u32 %v1852, 7
        %v1854 = vsub.s32 0, %v1853
        %v1855 = vrot.slane %v1817, %v1854
        %v1856 = vlaneseq
        %v1857 = vshrl.u32 %v1856, 7
        %v1858 = vsub.s32 0, %v1857
        %v1859 = vrot.slane %v1831, %v1858
        %v1860 = vlaneseq
        %v1861 = vshrl.u32 %v1860, 7
        %v1862 = vsub.s32 0, %v1861
        %v1863 = vrot.slane %v1833, %v1862
        %v1864 = vlaneseq
        %v1865 = vshrl.u32 %v1864, 7
        %v1866 = vsub.s32 0, %v1865
        %v1867 = vrot.slane %v1835, %v1866
        %v1876 = vadd.f32 %v269, %v1839
        %v1877 = vadd.f32 %v269, %v1843
        %v1878 = vadd.f32 %v269, %v1847
        %v1879 = vadd.f32 %v269, %v1851
        %v1880 = vadd.f32 %v269, %v1855
        %v1881 = vadd.f32 %v269, %v1859
        %v1882 = vadd.f32 %v269, %v1863
        %v1883 = vadd.f32 %v269, %v1867
        %v1884 = vtanh.pop %v1876
        %v1885 = vtanh.pop %v1877
        %v1886 = vtanh.pop %v1878
        %v1887 = vtanh.pop %v1879
        %v1888 = vtanh.pop %v1880
        %v1889 = vtanh.pop %v1881
        %v1890 = vtanh.pop %v1882
        %v1891 = vtanh.pop %v1883
        %v1892 = vmul.f32 %v1884, %v197
        %v1893 = vmul.f32 %v1885, %v197
        %v1894 = vmul.f32 %v1886, %v197
        %v1895 = vmul.f32 %v1887, %v197
        %v1896 = vmul.f32 %v1888, %v197
        %v1897 = vmul.f32 %v1889, %v197
        %v1898 = vmul.f32 %v1890, %v197
        %v1899 = vmul.f32 %v1891, %v197
        %1900 = vadd.xlane.f32.xlu0 %v1892
        %v1901 = vpop.xlane.xlu0 %1900
        %1902 = vadd.xlane.f32.xlu0 %v1893
        %v1903 = vpop.xlane.xlu0 %1902
        %1904 = vadd.xlane.f32.xlu0 %v1894
        %v1905 = vpop.xlane.xlu0 %1904
        %1906 = vadd.xlane.f32.xlu0 %v1895
        %v1907 = vpop.xlane.xlu0 %1906
        %1908 = vadd.xlane.f32.xlu0 %v1896
        %v1909 = vpop.xlane.xlu0 %1908
        %1910 = vadd.xlane.f32.xlu0 %v1897
        %v1911 = vpop.xlane.xlu0 %1910
        %1912 = vadd.xlane.f32.xlu0 %v1898
        %v1913 = vpop.xlane.xlu0 %1912
        %1914 = vadd.xlane.f32.xlu0 %v1899
        %v1915 = vpop.xlane.xlu0 %1914
        %v1924 = vlaneseq
        %v1925 = vand.u32 %v1924, 127
        %v1926 = vlaneseq
        %v1927 = vshrl.u32 %v1926, 7
        %v1928 = vsub.s32 %v1925, %v1927
        %v1929 = vrot.slane %v1901, %v1928
        %v1930 = vlaneseq
        %v1931 = vshrl.u32 %v1930, 7
        %v1932 = vsub.s32 %v1925, %v1931
        %v1933 = vrot.slane %v1903, %v1932
        %v1934 = vlaneseq
        %v1935 = vshrl.u32 %v1934, 7
        %v1936 = vsub.s32 %v1925, %v1935
        %v1937 = vrot.slane %v1905, %v1936
        %v1938 = vlaneseq
        %v1939 = vshrl.u32 %v1938, 7
        %v1940 = vsub.s32 %v1925, %v1939
        %v1941 = vrot.slane %v1907, %v1940
        %v1942 = vlaneseq
        %v1943 = vshrl.u32 %v1942, 7
        %v1944 = vsub.s32 %v1925, %v1943
        %v1945 = vrot.slane %v1909, %v1944
        %v1946 = vlaneseq
        %v1947 = vshrl.u32 %v1946, 7
        %v1948 = vsub.s32 %v1925, %v1947
        %v1949 = vrot.slane %v1911, %v1948
        %v1950 = vlaneseq
        %v1951 = vshrl.u32 %v1950, 7
        %v1952 = vsub.s32 %v1925, %v1951
        %v1953 = vrot.slane %v1913, %v1952
        %v1954 = vlaneseq
        %v1955 = vshrl.u32 %v1954, 7
        %v1956 = vsub.s32 %v1925, %v1955
        %v1957 = vrot.slane %v1915, %v1956
        %vm1958 = vcmask 1041409
        %v1959 = vsel %vm1958, %v1933, %v1929
        %vm1960 = vcmask 1042434
        %v1961 = vsel %vm1960, %v1937, %v1959
        %vm1962 = vcmask 1043459
        %v1963 = vsel %vm1962, %v1941, %v1961
        %vm1964 = vcmask 1044484
        %v1965 = vsel %vm1964, %v1945, %v1963
        %vm1966 = vcmask 1045509
        %v1967 = vsel %vm1966, %v1949, %v1965
        %vm1968 = vcmask 1046534
        %v1969 = vsel %vm1968, %v1953, %v1967
        %vm1970 = vcmask 1047559
        %v1971 = vsel %vm1970, %v1957, %v1969
        %vm1973 = vcmask 64512
        %v1974 = vsel %vm1973, %v1971, -inf
        %1975 = vmax.xlane.f32.xlu0 %v1974
        %v1976 = vpop.xlane.xlu0 %1975
        %v1978 = vlaneseq
        %v1979 = vshrl.u32 %v1978, 7
        %v1980 = vsub.s32 0, %v1979
        %v1981 = vrot.slane %v1976, %v1980
        %v1982 = vlaneseq
        %v1983 = vshrl.u32 %v1982, 7
        %v1984 = vsub.s32 1, %v1983
        %v1985 = vrot.slane %v1976, %v1984
        %v1986 = vlaneseq
        %v1987 = vshrl.u32 %v1986, 7
        %v1988 = vsub.s32 2, %v1987
        %v1989 = vrot.slane %v1976, %v1988
        %v1990 = vlaneseq
        %v1991 = vshrl.u32 %v1990, 7
        %v1992 = vsub.s32 3, %v1991
        %v1993 = vrot.slane %v1976, %v1992
        %v1994 = vlaneseq
        %v1995 = vshrl.u32 %v1994, 7
        %v1996 = vsub.s32 4, %v1995
        %v1997 = vrot.slane %v1976, %v1996
        %v1998 = vlaneseq
        %v1999 = vshrl.u32 %v1998, 7
        %v2000 = vsub.s32 5, %v1999
        %v2001 = vrot.slane %v1976, %v2000
        %v2002 = vlaneseq
        %v2003 = vshrl.u32 %v2002, 7
        %v2004 = vsub.s32 6, %v2003
        %v2005 = vrot.slane %v1976, %v2004
        %v2006 = vlaneseq
        %v2007 = vshrl.u32 %v2006, 7
        %v2008 = vsub.s32 7, %v2007
        %v2009 = vrot.slane %v1976, %v2008
        %v2018 = vsub.f32 %v1901, %v1981
        %v2019 = vsub.f32 %v1903, %v1985
        %v2020 = vsub.f32 %v1905, %v1989
        %v2021 = vsub.f32 %v1907, %v1993
        %v2022 = vsub.f32 %v1909, %v1997
        %v2023 = vsub.f32 %v1911, %v2001
        %v2024 = vsub.f32 %v1913, %v2005
        %v2025 = vsub.f32 %v1915, %v2009
        %v2026 = vmul.f32 %v2018, 1.442695
        %v2027 = vpow.pop %v2026
        %v2028 = vmul.f32 %v2019, 1.442695
        %v2029 = vpow.pop %v2028
        %v2030 = vmul.f32 %v2020, 1.442695
        %v2031 = vpow.pop %v2030
        %v2032 = vmul.f32 %v2021, 1.442695
        %v2033 = vpow.pop %v2032
        %v2034 = vmul.f32 %v2022, 1.442695
        %v2035 = vpow.pop %v2034
        %v2036 = vmul.f32 %v2023, 1.442695
        %v2037 = vpow.pop %v2036
        %v2038 = vmul.f32 %v2024, 1.442695
        %v2039 = vpow.pop %v2038
        %v2040 = vmul.f32 %v2025, 1.442695
        %v2041 = vpow.pop %v2040
        %2050 = vset.pattern.permute.xlu0 0
        %2051 = vperm.xlu0 %2050, %v2027
        %v2052 = vpop.permute.xlu0 %2051
        %2053 = vset.pattern.permute.xlu0 0
        %2054 = vperm.xlu0 %2053, %v2029
        %v2055 = vpop.permute.xlu0 %2054
        %2056 = vset.pattern.permute.xlu0 0
        %2057 = vperm.xlu0 %2056, %v2031
        %v2058 = vpop.permute.xlu0 %2057
        %2059 = vset.pattern.permute.xlu0 0
        %2060 = vperm.xlu0 %2059, %v2033
        %v2061 = vpop.permute.xlu0 %2060
        %2062 = vset.pattern.permute.xlu0 0
        %2063 = vperm.xlu0 %2062, %v2035
        %v2064 = vpop.permute.xlu0 %2063
        %2065 = vset.pattern.permute.xlu0 0
        %2066 = vperm.xlu0 %2065, %v2037
        %v2067 = vpop.permute.xlu0 %2066
        %2068 = vset.pattern.permute.xlu0 0
        %2069 = vperm.xlu0 %2068, %v2039
        %v2070 = vpop.permute.xlu0 %2069
        %2071 = vset.pattern.permute.xlu0 0
        %2072 = vperm.xlu0 %2071, %v2041
        %v2073 = vpop.permute.xlu0 %2072
        %v2074 = vlaneseq
        %v2075 = vshrl.u32 %v2074, 7
        %v2076 = vsub.s32 %v1925, %v2075
        %v2077 = vrot.slane %v2052, %v2076
        %v2078 = vlaneseq
        %v2079 = vshrl.u32 %v2078, 7
        %v2080 = vsub.s32 %v1925, %v2079
        %v2081 = vrot.slane %v2055, %v2080
        %v2082 = vlaneseq
        %v2083 = vshrl.u32 %v2082, 7
        %v2084 = vsub.s32 %v1925, %v2083
        %v2085 = vrot.slane %v2058, %v2084
        %v2086 = vlaneseq
        %v2087 = vshrl.u32 %v2086, 7
        %v2088 = vsub.s32 %v1925, %v2087
        %v2089 = vrot.slane %v2061, %v2088
        %v2090 = vlaneseq
        %v2091 = vshrl.u32 %v2090, 7
        %v2092 = vsub.s32 %v1925, %v2091
        %v2093 = vrot.slane %v2064, %v2092
        %v2094 = vlaneseq
        %v2095 = vshrl.u32 %v2094, 7
        %v2096 = vsub.s32 %v1925, %v2095
        %v2097 = vrot.slane %v2067, %v2096
        %v2098 = vlaneseq
        %v2099 = vshrl.u32 %v2098, 7
        %v2100 = vsub.s32 %v1925, %v2099
        %v2101 = vrot.slane %v2070, %v2100
        %v2102 = vlaneseq
        %v2103 = vshrl.u32 %v2102, 7
        %v2104 = vsub.s32 %v1925, %v2103
        %v2105 = vrot.slane %v2073, %v2104
        %v2106 = vsel %vm1958, %v2081, %v2077
        %v2107 = vsel %vm1960, %v2085, %v2106
        %v2108 = vsel %vm1962, %v2089, %v2107
        %v2109 = vsel %vm1964, %v2093, %v2108
        %v2110 = vsel %vm1966, %v2097, %v2109
        %v2111 = vsel %vm1968, %v2101, %v2110
        %v2112 = vsel %vm1970, %v2105, %v2111
        %v2114 = vsel %vm1973, %v2112, 0.0
        %2115 = vadd.xlane.f32.xlu0 %v2114
        %v2116 = vpop.xlane.xlu0 %2115
        %v2117 = vlog2.pop %v2116
        %v2118 = vmul.f32 %v2117, 0.6931472
        %v2120 = vlaneseq
        %v2121 = vshrl.u32 %v2120, 7
        %v2122 = vsub.s32 0, %v2121
        %v2123 = vrot.slane %v2118, %v2122
        %v2124 = vlaneseq
        %v2125 = vshrl.u32 %v2124, 7
        %v2126 = vsub.s32 1, %v2125
        %v2127 = vrot.slane %v2118, %v2126
        %v2128 = vlaneseq
        %v2129 = vshrl.u32 %v2128, 7
        %v2130 = vsub.s32 2, %v2129
        %v2131 = vrot.slane %v2118, %v2130
        %v2132 = vlaneseq
        %v2133 = vshrl.u32 %v2132, 7
        %v2134 = vsub.s32 3, %v2133
        %v2135 = vrot.slane %v2118, %v2134
        %v2136 = vlaneseq
        %v2137 = vshrl.u32 %v2136, 7
        %v2138 = vsub.s32 4, %v2137
        %v2139 = vrot.slane %v2118, %v2138
        %v2140 = vlaneseq
        %v2141 = vshrl.u32 %v2140, 7
        %v2142 = vsub.s32 5, %v2141
        %v2143 = vrot.slane %v2118, %v2142
        %v2144 = vlaneseq
        %v2145 = vshrl.u32 %v2144, 7
        %v2146 = vsub.s32 6, %v2145
        %v2147 = vrot.slane %v2118, %v2146
        %v2148 = vlaneseq
        %v2149 = vshrl.u32 %v2148, 7
        %v2150 = vsub.s32 7, %v2149
        %v2151 = vrot.slane %v2118, %v2150
        %v2160 = vsub.f32 %v2018, %v2123
        %v2161 = vsub.f32 %v2019, %v2127
        %v2162 = vsub.f32 %v2020, %v2131
        %v2163 = vsub.f32 %v2021, %v2135
        %v2164 = vsub.f32 %v2022, %v2139
        %v2165 = vsub.f32 %v2023, %v2143
        %v2166 = vsub.f32 %v2024, %v2147
        %v2167 = vsub.f32 %v2025, %v2151
        %2176 = vset.pattern.permute.xlu0 0
        %2177 = vperm.xlu0 %2176, %v2160
        %v2178 = vpop.permute.xlu0 %2177
        %2179 = vset.pattern.permute.xlu0 0
        %2180 = vperm.xlu0 %2179, %v2161
        %v2181 = vpop.permute.xlu0 %2180
        %2182 = vset.pattern.permute.xlu0 0
        %2183 = vperm.xlu0 %2182, %v2162
        %v2184 = vpop.permute.xlu0 %2183
        %2185 = vset.pattern.permute.xlu0 0
        %2186 = vperm.xlu0 %2185, %v2163
        %v2187 = vpop.permute.xlu0 %2186
        %2188 = vset.pattern.permute.xlu0 0
        %2189 = vperm.xlu0 %2188, %v2164
        %v2190 = vpop.permute.xlu0 %2189
        %2191 = vset.pattern.permute.xlu0 0
        %2192 = vperm.xlu0 %2191, %v2165
        %v2193 = vpop.permute.xlu0 %2192
        %2194 = vset.pattern.permute.xlu0 0
        %2195 = vperm.xlu0 %2194, %v2166
        %v2196 = vpop.permute.xlu0 %2195
        %2197 = vset.pattern.permute.xlu0 0
        %2198 = vperm.xlu0 %2197, %v2167
        %v2199 = vpop.permute.xlu0 %2198
        %v2200 = vlaneseq
        %v2201 = vshrl.u32 %v2200, 7
        %v2202 = vsub.s32 %v1925, %v2201
        %v2203 = vrot.slane %v2178, %v2202
        %v2204 = vlaneseq
        %v2205 = vshrl.u32 %v2204, 7
        %v2206 = vsub.s32 %v1925, %v2205
        %v2207 = vrot.slane %v2181, %v2206
        %v2208 = vlaneseq
        %v2209 = vshrl.u32 %v2208, 7
        %v2210 = vsub.s32 %v1925, %v2209
        %v2211 = vrot.slane %v2184, %v2210
        %v2212 = vlaneseq
        %v2213 = vshrl.u32 %v2212, 7
        %v2214 = vsub.s32 %v1925, %v2213
        %v2215 = vrot.slane %v2187, %v2214
        %v2216 = vlaneseq
        %v2217 = vshrl.u32 %v2216, 7
        %v2218 = vsub.s32 %v1925, %v2217
        %v2219 = vrot.slane %v2190, %v2218
        %v2220 = vlaneseq
        %v2221 = vshrl.u32 %v2220, 7
        %v2222 = vsub.s32 %v1925, %v2221
        %v2223 = vrot.slane %v2193, %v2222
        %v2224 = vlaneseq
        %v2225 = vshrl.u32 %v2224, 7
        %v2226 = vsub.s32 %v1925, %v2225
        %v2227 = vrot.slane %v2196, %v2226
        %v2228 = vlaneseq
        %v2229 = vshrl.u32 %v2228, 7
        %v2230 = vsub.s32 %v1925, %v2229
        %v2231 = vrot.slane %v2199, %v2230
        %v2232 = vsel %vm1958, %v2207, %v2203
        %v2233 = vsel %vm1960, %v2211, %v2232
        %v2234 = vsel %vm1962, %v2215, %v2233
        %v2235 = vsel %vm1964, %v2219, %v2234
        %v2236 = vsel %vm1966, %v2223, %v2235
        %v2237 = vsel %vm1968, %v2227, %v2236
        %v2238 = vsel %vm1970, %v2231, %v2237
        %2240 = vst.msk [vmem:[%s173] sm:$0xff] %vm1973, %v2238
        %s2241 = sand.u32 %s75, 1
        %s2242 = scalar_lea.sflag [#allocation4], %s2241
        %s2243 = sand.u32 %s75, 1
        %s2244 = smul.addr %s2243, 8
        %s2245 = scalar_lea.vmem [#allocation7], %s2244
        // Predicated region
        $region37: #{tpu_custom_call.1} parent=27 // pred_check
          %p2246 = pneg %p85
        $region38: #{tpu_custom_call.1} parent=27 // pred_check_branch
          %2248 = sbr.rel (%p2246) target = $region40
        $region39: #{tpu_custom_call.1} parent=27 // pred_region
          %s2250 = ssub.s32 128, 128
          %2251 = vsyncadd %s2242, %s2250
          %s2252 = smul.addr %s20, 128
          %s2253 = scalar_lea.hbm %s2, %s2252
          %s2255 = sshll.u32 %s2245, 4
          %s2256 = int_to_ptr.vmem [resolvable:$true] %s2255
          %2258 = dma.vmem_to_hbm [thread:$0]  %s2256, 128, %s2253, %s2242
        $region40: #{tpu_custom_call.1} parent=27 // pred_fallthru
          _
      $region28: #{tpu_custom_call.1} parent=5 // pred_fallthru
        _
      %p2259 = scmp.le.s32.totalorder 2, %s15
      // Predicated region
      $region41: #{tpu_custom_call.1} parent=5 // pred_check
        %p2260 = pneg %p2259
      $region42: #{tpu_custom_call.1} parent=5 // pred_check_branch
        %2262 = sbr.rel (%p2260) target = $region44
      $region43: #{tpu_custom_call.1} parent=5 // pred_region
        %s2263 = ssub.s32 %s15, 2
        // Predicated region
        $region45: #{tpu_custom_call.1} parent=43 // pred_check
          %p2264 = pneg %p91
        $region46: #{tpu_custom_call.1} parent=43 // pred_check_branch
          %2266 = sbr.rel (%p2264) target = $region48
        $region47: #{tpu_custom_call.1} parent=43 // pred_region
          %s2267 = sand.u32 %s76, 1
          %s2268 = scalar_lea.sflag [#allocation4], %s2267
          %s2269 = sand.u32 %s76, 1
          %s2270 = smul.addr %s2269, 8
          %s2271 = scalar_lea.vmem [#allocation7], %s2270
          %2272 = dma.done %s2268, 128
        $region48: #{tpu_custom_call.1} parent=43 // pred_fallthru
          _
      $region44: #{tpu_custom_call.1} parent=5 // pred_fallthru
        _
    $region6: #{tpu_custom_call.1} parent=1 // loop_footer
      %s19 = sadd.s32 1, %s15
    $region7: #{tpu_custom_call.1} parent=1 // loop_footer_branch
      %14 = sbr.rel target = $region3
    $region8: #{tpu_custom_call.1} parent=1 // loop_exit
      _
    %2273 = vsyncpa [#allocation3], 1
    %s2274 = scalar_lea.sflag [#allocation3], 1
    %2275 = vsyncpa %s2274, 1
    %2276 = vsyncpa [#allocation6], 1
    %2277 = vsyncpa [#allocation4], 1
    %s2278 = scalar_lea.sflag [#allocation4], 1
    %2279 = vsyncpa %s2278, 1

</llo_original>
